<compile_context>
chip_gen: v7x
topology: tpu7x:2x2x1
jax: 0.10.0
libtpu: 0.0.40
codegen_flags: <defaults>
</compile_context>

<pallas_src>
import functools
import math

import jax
import jax.numpy as jnp
from jax.experimental import pallas as pl
from jax.experimental.pallas import tpu as pltpu

# ----------------------------- tiny BERT config ------------------------------
HIDDEN = 128          # hidden size (multiple of 128 -> lane friendly)
NUM_HEADS = 2
HEAD_DIM = HIDDEN // NUM_HEADS
INTERMEDIATE = 256
NUM_LAYERS = 2
VOCAB = 128
MAX_POS = 32
TYPE_VOCAB = 2
NUM_LABELS = 2
LABEL_PAD = 128       # lane-dense classifier output width (sliced to NUM_LABELS outside)
LN_EPS = 1e-12


# --------------------------------- helpers -----------------------------------
def _ln(x, g, b, eps):
    """f32 LayerNorm over the last axis; g/b broadcast as [1, H]."""
    mu = jnp.mean(x, axis=-1, keepdims=True)
    xc = x - mu
    var = jnp.mean(xc * xc, axis=-1, keepdims=True)
    return xc * jax.lax.rsqrt(var + eps) * g + b


def _mm(a_f32, w_bf16, b_f32):
    """bf16 MXU matmul with f32 accumulation + f32 bias add."""
    y = jnp.dot(a_f32.astype(jnp.bfloat16), w_bf16,
                preferred_element_type=jnp.float32)
    return y + b_f32


# ------------------------------ fused Pallas kernel --------------------------
def _fused_bert_kernel(emb_ref, mask_ref, embg_ref, embb_ref,
                       wqkv_ref, bqkv_ref, wo_ref, bo_ref, ln1g_ref, ln1b_ref,
                       wi_ref, bi_ref, wf_ref, bf_ref, ln2g_ref, ln2b_ref,
                       wp_ref, bp_ref, wc_ref, bc_ref,
                       logits_ref, h_ref,
                       *, num_heads, head_dim, scale, eps):
    """Whole BERT classifier: grid=(NUM_LAYERS,), activation slab lives in h_ref."""
    l = pl.program_id(0)
    H = num_heads * head_dim

    # ---- layer 0: embedding LayerNorm into the resident activation scratch ----
    @pl.when(l == 0)
    def _():
        h_ref[...] = _ln(emb_ref[...], embg_ref[...], embb_ref[...], eps)

    x = h_ref[...]                                   # [M, H] f32
    mask = mask_ref[...]                             # [M, M] additive bias (block-diag + padding)

    # ---- fused QKV projection: [M, 3H]; slices are 128-lane aligned (free) ----
    qkv = _mm(x, wqkv_ref[0], bqkv_ref[0])
    q = qkv[:, 0 * H:1 * H]
    k = qkv[:, 1 * H:2 * H].astype(jnp.bfloat16)
    v = qkv[:, 2 * H:3 * H]

    # ---- per-head attention without lane slicing/concat: mask other head's
    #      columns to zero (VPU mul) so the full-width matmul contracts only
    #      head-h dims; head contexts accumulate into disjoint lanes. ----
    lane = jax.lax.broadcasted_iota(jnp.int32, (1, H), 1)
    ctx = jnp.zeros_like(x)
    for h in range(num_heads):
        hm = ((lane >= h * head_dim) & (lane < (h + 1) * head_dim)).astype(jnp.float32)
        qh = (q * hm).astype(jnp.bfloat16)           # [M, H], non-head lanes zeroed
        # contraction over last dim of both operands -> no explicit K transpose
        s = jax.lax.dot_general(qh, k, (((1,), (1,)), ((), ())),
                                preferred_element_type=jnp.float32)
        s = s * scale + mask
        s = s - jnp.max(s, axis=-1, keepdims=True)
        p = jnp.exp(s)
        p = p * pl.reciprocal(jnp.sum(p, axis=-1, keepdims=True), approx=True)
        vh = (v * hm).astype(jnp.bfloat16)           # zero outside head-h lanes
        ctx = ctx + jnp.dot(p.astype(jnp.bfloat16), vh,
                            preferred_element_type=jnp.float32)

    # ---- attention output projection + residual + LayerNorm ----
    attn_out = _mm(ctx, wo_ref[0], bo_ref[0])
    h1 = _ln(attn_out + x, ln1g_ref[0], ln1b_ref[0], eps)

    # ---- feed-forward + residual + LayerNorm ----
    # TODO(synk): HF BERT uses exact erf-GELU; tanh approximation used here.
    inter = jax.nn.gelu(_mm(h1, wi_ref[0], bi_ref[0]), approximate=True)
    ffn = _mm(inter, wf_ref[0], bf_ref[0])
    h2 = _ln(ffn + h1, ln2g_ref[0], ln2b_ref[0], eps)
    h_ref[...] = h2

    # ---- last layer: fused pooler (tanh dense) + classifier on all rows ----
    # (CLS rows and the NUM_LABELS columns are selected outside the kernel;
    #  computing all 16 rows keeps the MXU fed and the store lane-dense.)
    @pl.when(l == pl.num_programs(0) - 1)
    def _():
        pooled = jnp.tanh(_mm(h2, wp_ref[...], bp_ref[...]))     # [M, H]
        logits_ref[...] = _mm(pooled, wc_ref[...], bc_ref[...])  # [M, LABEL_PAD]


def fused_bert_forward(params, emb2d, mask_bias):
    """emb2d: [M, H] f32 embeddings; mask_bias: [M, M] f32 -> [M, LABEL_PAD] f32."""
    M, H = emb2d.shape
    I = INTERMEDIATE

    def fixed(shape):
        nd = len(shape)
        return pl.BlockSpec(shape, lambda l, _n=nd: (0,) * _n)

    def per_layer(shape):
        nd = len(shape)
        return pl.BlockSpec((1,) + shape, lambda l, _n=nd: (l,) + (0,) * _n)

    kernel = functools.partial(
        _fused_bert_kernel,
        num_heads=NUM_HEADS, head_dim=HEAD_DIM,
        scale=1.0 / math.sqrt(HEAD_DIM), eps=LN_EPS)

    return pl.pallas_call(
        kernel,
        out_shape=jax.ShapeDtypeStruct((M, LABEL_PAD), jnp.float32),
        grid=(NUM_LAYERS,),
        in_specs=[
            fixed((M, H)),                                  # embeddings
            fixed((M, M)),                                  # additive attention mask
            fixed((1, H)), fixed((1, H)),                   # embedding LN gamma/beta
            per_layer((H, 3 * H)), per_layer((1, 3 * H)),   # Wqkv, bqkv (stacked over L)
            per_layer((H, H)), per_layer((1, H)),           # Wo, bo
            per_layer((1, H)), per_layer((1, H)),           # ln1 gamma/beta
            per_layer((H, I)), per_layer((1, I)),           # Wi, bi
            per_layer((I, H)), per_layer((1, H)),           # Wf, bf
            per_layer((1, H)), per_layer((1, H)),           # ln2 gamma/beta
            fixed((H, H)), fixed((1, H)),                   # pooler
            fixed((H, LABEL_PAD)), fixed((1, LABEL_PAD)),   # classifier (lane padded)
        ],
        out_specs=pl.BlockSpec((M, LABEL_PAD), lambda l: (0, 0)),
        scratch_shapes=[pltpu.VMEM((M, H), jnp.float32)],   # resident activation slab
        compiler_params=pltpu.CompilerParams(dimension_semantics=("arbitrary",)),
    )(emb2d, mask_bias,
      params["emb_ln_g"], params["emb_ln_b"],
      params["Wqkv"], params["bqkv"], params["Wo"], params["bo"],
      params["ln1_g"], params["ln1_b"],
      params["Wi"], params["bi"], params["Wf"], params["bf"],
      params["ln2_g"], params["ln2_b"],
      params["Wp"], params["bp"], params["Wc_pad"], params["bc_pad"])


# --------------------------- parameter construction --------------------------
def init_params(key):
    def nrm(k, shape, dtype=jnp.float32):
        return (0.02 * jax.random.normal(k, shape, jnp.float32)).astype(dtype)

    keys = iter(jax.random.split(key, 8 + NUM_LAYERS * 8))

    params = {
        "word_emb": nrm(next(keys), (VOCAB, HIDDEN)),
        "pos_emb": nrm(next(keys), (MAX_POS, HIDDEN)),
        "type_emb": nrm(next(keys), (TYPE_VOCAB, HIDDEN)),
        "emb_ln_g": jnp.ones((1, HIDDEN), jnp.float32),
        "emb_ln_b": jnp.zeros((1, HIDDEN), jnp.float32),
        # pooler + classifier (bf16 MXU weights, f32 biases)
        "Wp": nrm(next(keys), (HIDDEN, HIDDEN), jnp.bfloat16),
        "bp": jnp.zeros((1, HIDDEN), jnp.float32),
    }
    wc = nrm(next(keys), (HIDDEN, NUM_LABELS), jnp.float32)
    wc_pad = jnp.zeros((HIDDEN, LABEL_PAD), jnp.float32).at[:, :NUM_LABELS].set(wc)
    params["Wc_pad"] = wc_pad.astype(jnp.bfloat16)
    params["bc_pad"] = jnp.zeros((1, LABEL_PAD), jnp.float32)

    # per-layer weights, stacked with leading L axis for BlockSpec pipelining
    stacks = {n: [] for n in ("Wqkv", "bqkv", "Wo", "bo", "ln1_g", "ln1_b",
                              "Wi", "bi", "Wf", "bf", "ln2_g", "ln2_b")}
    for _ in range(NUM_LAYERS):
        wq = nrm(next(keys), (HIDDEN, HIDDEN))
        wk = nrm(next(keys), (HIDDEN, HIDDEN))
        wv = nrm(next(keys), (HIDDEN, HIDDEN))
        stacks["Wqkv"].append(jnp.concatenate([wq, wk, wv], axis=1).astype(jnp.bfloat16))
        stacks["bqkv"].append(jnp.zeros((1, 3 * HIDDEN), jnp.float32))
        stacks["Wo"].append(nrm(next(keys), (HIDDEN, HIDDEN), jnp.bfloat16))
        stacks["bo"].append(jnp.zeros((1, HIDDEN), jnp.float32))
        stacks["ln1_g"].append(jnp.ones((1, HIDDEN), jnp.float32))
        stacks["ln1_b"].append(jnp.zeros((1, HIDDEN), jnp.float32))
        stacks["Wi"].append(nrm(next(keys), (HIDDEN, INTERMEDIATE), jnp.bfloat16))
        stacks["bi"].append(jnp.zeros((1, INTERMEDIATE), jnp.float32))
        stacks["Wf"].append(nrm(next(keys), (INTERMEDIATE, HIDDEN), jnp.bfloat16))
        stacks["bf"].append(jnp.zeros((1, HIDDEN), jnp.float32))
        stacks["ln2_g"].append(jnp.ones((1, HIDDEN), jnp.float32))
        stacks["ln2_b"].append(jnp.zeros((1, HIDDEN), jnp.float32))
    for name, lst in stacks.items():
        params[name] = jnp.stack(lst, axis=0)
    return params


# -------------------------------- forward pass --------------------------------
def classifier_forward(params, input_ids, attention_mask):
    """Mirrors ClassifierModel.forward: BERT -> pooler -> classifier -> squeeze(-1)."""
    B, S = input_ids.shape
    M = B * S
    H = HIDDEN

    # --- embeddings (gathers are glue; XLA fuses them) ---
    tok_type_ids = jnp.zeros((B, S), jnp.int32)
    emb = (jnp.take(params["word_emb"], input_ids, axis=0)
           + params["pos_emb"][:S][None, :, :]
           + jnp.take(params["type_emb"], tok_type_ids, axis=0))
    emb2d = emb.reshape(M, H).astype(jnp.float32)

    # --- block-diagonal additive attention bias over the flattened [B*S] axis:
    #     forbids cross-batch attention and masks padded keys ---
    key_valid = attention_mask.astype(jnp.float32).reshape(M)
    bidx = jnp.repeat(jnp.arange(B), S)
    allowed = (bidx[:, None] == bidx[None, :]) & (key_valid[None, :] > 0.5)
    mask_bias = jnp.where(allowed, 0.0, -10000.0).astype(jnp.float32)   # [M, M]

    # --- single fused pallas_call: embed-LN + all layers + pooler/classifier ---
    logits_padded = fused_bert_forward(params, emb2d, mask_bias)        # [M, LABEL_PAD]

    # CLS rows (one per batch element), real label columns
    logits = logits_padded[::S, :NUM_LABELS]                            # [B, NUM_LABELS]

    # torch .squeeze(-1): only squeezes if last dim == 1 (no-op for num_labels=2)
    if logits.shape[-1] == 1:
        logits = jnp.squeeze(logits, axis=-1)
    return logits


# ----------------------------------- main -------------------------------------
if __name__ == "__main__":
    key = jax.random.PRNGKey(0)
    pkey, ikey = jax.random.split(key)

    params = init_params(pkey)

    B, S = 2, 8
    input_ids = jax.random.randint(ikey, (B, S), 0, VOCAB, dtype=jnp.int32)
    # second sequence has 3 padding positions to exercise the attention mask
    attention_mask = jnp.array(
        [[1, 1, 1, 1, 1, 1, 1, 1],
         [1, 1, 1, 1, 1, 0, 0, 0]], dtype=jnp.int32)

    logits = classifier_forward(params, input_ids, attention_mask)
    logits = jax.block_until_ready(logits)
    assert logits.shape == (B, NUM_LABELS)
    print("KERNEL_OK")
</pallas_src>

<mosaic_0001>
module attributes {stable_mosaic.version = 11 : i64} {
  func.func @_fused_bert_kernel(%arg0: i32, %arg1: memref<16x128xf32, #tpu.memory_space<vmem>>, %arg2: memref<16x16xf32, #tpu.memory_space<vmem>>, %arg3: memref<1x128xf32, #tpu.memory_space<vmem>>, %arg4: memref<1x128xf32, #tpu.memory_space<vmem>>, %arg5: memref<1x128x384xbf16, #tpu.memory_space<vmem>>, %arg6: memref<1x1x384xf32, #tpu.memory_space<vmem>>, %arg7: memref<1x128x128xbf16, #tpu.memory_space<vmem>>, %arg8: memref<1x1x128xf32, #tpu.memory_space<vmem>>, %arg9: memref<1x1x128xf32, #tpu.memory_space<vmem>>, %arg10: memref<1x1x128xf32, #tpu.memory_space<vmem>>, %arg11: memref<1x128x256xbf16, #tpu.memory_space<vmem>>, %arg12: memref<1x1x256xf32, #tpu.memory_space<vmem>>, %arg13: memref<1x256x128xbf16, #tpu.memory_space<vmem>>, %arg14: memref<1x1x128xf32, #tpu.memory_space<vmem>>, %arg15: memref<1x1x128xf32, #tpu.memory_space<vmem>>, %arg16: memref<1x1x128xf32, #tpu.memory_space<vmem>>, %arg17: memref<128x128xbf16, #tpu.memory_space<vmem>>, %arg18: memref<1x128xf32, #tpu.memory_space<vmem>>, %arg19: memref<128x128xbf16, #tpu.memory_space<vmem>>, %arg20: memref<1x128xf32, #tpu.memory_space<vmem>>, %arg21: memref<16x128xf32, #tpu.memory_space<vmem>>, %arg22: memref<16x128xf32, #tpu.memory_space<vmem>>) attributes {dimension_semantics = [#tpu.dimension_semantics<arbitrary>], iteration_bounds = array<i64: 2>, scalar_prefetch = 0 : i64, scratch_operands = 1 : i64, tpu.core_type = #tpu.core_type<tc>, window_params = [{pipeline_mode = #tpu.pipeline_mode<synchronous>, transform_indices = @transform_0, window_bounds = array<i64: 16, 128>}, {pipeline_mode = #tpu.pipeline_mode<synchronous>, transform_indices = @transform_1, window_bounds = array<i64: 16, 16>}, {pipeline_mode = #tpu.pipeline_mode<synchronous>, transform_indices = @transform_2, window_bounds = array<i64: 1, 128>}, {pipeline_mode = #tpu.pipeline_mode<synchronous>, transform_indices = @transform_3, window_bounds = array<i64: 1, 128>}, {transform_indices = @transform_4, window_bounds = array<i64: 1, 128, 384>}, {transform_indices = @transform_5, window_bounds = array<i64: 1, 1, 384>}, {transform_indices = @transform_6, window_bounds = array<i64: 1, 128, 128>}, {transform_indices = @transform_7, window_bounds = array<i64: 1, 1, 128>}, {transform_indices = @transform_8, window_bounds = array<i64: 1, 1, 128>}, {transform_indices = @transform_9, window_bounds = array<i64: 1, 1, 128>}, {transform_indices = @transform_10, window_bounds = array<i64: 1, 128, 256>}, {transform_indices = @transform_11, window_bounds = array<i64: 1, 1, 256>}, {transform_indices = @transform_12, window_bounds = array<i64: 1, 256, 128>}, {transform_indices = @transform_13, window_bounds = array<i64: 1, 1, 128>}, {transform_indices = @transform_14, window_bounds = array<i64: 1, 1, 128>}, {transform_indices = @transform_15, window_bounds = array<i64: 1, 1, 128>}, {pipeline_mode = #tpu.pipeline_mode<synchronous>, transform_indices = @transform_16, window_bounds = array<i64: 128, 128>}, {pipeline_mode = #tpu.pipeline_mode<synchronous>, transform_indices = @transform_17, window_bounds = array<i64: 1, 128>}, {pipeline_mode = #tpu.pipeline_mode<synchronous>, transform_indices = @transform_18, window_bounds = array<i64: 128, 128>}, {pipeline_mode = #tpu.pipeline_mode<synchronous>, transform_indices = @transform_19, window_bounds = array<i64: 1, 128>}, {pipeline_mode = #tpu.pipeline_mode<synchronous>, transform_indices = @transform_20, window_bounds = array<i64: 16, 128>}]} {
    %c0_i32 = arith.constant 0 : i32
    %0 = arith.cmpi eq, %arg0, %c0_i32 : i32
    %1 = arith.extui %0 : i1 to i32
    %c0_i32_0 = arith.constant 0 : i32
    %2 = arith.cmpi ne, %1, %c0_i32_0 : i32
    scf.if %2 {
      %c0_73 = arith.constant 0 : index
      %c0_74 = arith.constant 0 : index
      %170 = vector.load %arg1[%c0_73, %c0_74] : memref<16x128xf32, #tpu.memory_space<vmem>>, vector<16x128xf32>
      %c0_75 = arith.constant 0 : index
      %c0_76 = arith.constant 0 : index
      %171 = vector.load %arg3[%c0_75, %c0_76] : memref<1x128xf32, #tpu.memory_space<vmem>>, vector<1x128xf32>
      %c0_77 = arith.constant 0 : index
      %c0_78 = arith.constant 0 : index
      %172 = vector.load %arg4[%c0_77, %c0_78] : memref<1x128xf32, #tpu.memory_space<vmem>>, vector<1x128xf32>
      %cst_79 = arith.constant dense<0.000000e+00> : vector<16xf32>
      %173 = vector.multi_reduction <add>, %170, %cst_79 [1] : vector<16x128xf32> to vector<16xf32>
      %174 = vector.shape_cast %173 : vector<16xf32> to vector<16x1xf32>
      %cst_80 = arith.constant 1.280000e+02 : f32
      %175 = vector.broadcast %cst_80 : f32 to vector<16x1xf32>
      %176 = arith.divf %174, %175 : vector<16x1xf32>
      %177 = vector.broadcast %176 : vector<16x1xf32> to vector<16x128xf32>
      %178 = arith.subf %170, %177 : vector<16x128xf32>
      %179 = arith.mulf %178, %178 : vector<16x128xf32>
      %cst_81 = arith.constant dense<0.000000e+00> : vector<16xf32>
      %180 = vector.multi_reduction <add>, %179, %cst_81 [1] : vector<16x128xf32> to vector<16xf32>
      %181 = vector.shape_cast %180 : vector<16xf32> to vector<16x1xf32>
      %cst_82 = arith.constant 1.280000e+02 : f32
      %182 = vector.broadcast %cst_82 : f32 to vector<16x1xf32>
      %183 = arith.divf %181, %182 : vector<16x1xf32>
      %cst_83 = arith.constant 9.99999996E-13 : f32
      %184 = vector.broadcast %cst_83 : f32 to vector<16x1xf32>
      %185 = arith.addf %183, %184 : vector<16x1xf32>
      %186 = math.rsqrt %185 : vector<16x1xf32>
      %187 = vector.broadcast %186 : vector<16x1xf32> to vector<16x128xf32>
      %188 = arith.mulf %178, %187 : vector<16x128xf32>
      %189 = vector.broadcast %171 : vector<1x128xf32> to vector<16x128xf32>
      %190 = arith.mulf %188, %189 : vector<16x128xf32>
      %191 = vector.broadcast %172 : vector<1x128xf32> to vector<16x128xf32>
      %192 = arith.addf %190, %191 : vector<16x128xf32>
      %c0_84 = arith.constant 0 : index
      %c0_85 = arith.constant 0 : index
      %193 = vector.load %arg22[%c0_84, %c0_85] : memref<16x128xf32, #tpu.memory_space<vmem>>, vector<16x128xf32>
      tpu.vector_store %arg22[%c0_84, %c0_85], %192 {strides = array<i32>} : memref<16x128xf32, #tpu.memory_space<vmem>>, vector<16x128xf32>,
    } else {
    }
    %c0 = arith.constant 0 : index
    %c0_1 = arith.constant 0 : index
    %3 = vector.load %arg22[%c0, %c0_1] : memref<16x128xf32, #tpu.memory_space<vmem>>, vector<16x128xf32>
    %c0_2 = arith.constant 0 : index
    %c0_3 = arith.constant 0 : index
    %4 = vector.load %arg2[%c0_2, %c0_3] : memref<16x16xf32, #tpu.memory_space<vmem>>, vector<16x16xf32>
    %c0_4 = arith.constant 0 : index
    %c0_5 = arith.constant 0 : index
    %c0_6 = arith.constant 0 : index
    %5 = vector.load %arg5[%c0_4, %c0_5, %c0_6] : memref<1x128x384xbf16, #tpu.memory_space<vmem>>, vector<1x128x384xbf16>
    %6 = vector.shape_cast %5 : vector<1x128x384xbf16> to vector<128x384xbf16>
    %c0_7 = arith.constant 0 : index
    %c0_8 = arith.constant 0 : index
    %c0_9 = arith.constant 0 : index
    %7 = vector.load %arg6[%c0_7, %c0_8, %c0_9] : memref<1x1x384xf32, #tpu.memory_space<vmem>>, vector<1x1x384xf32>
    %8 = vector.shape_cast %7 : vector<1x1x384xf32> to vector<1x384xf32>
    %9 = arith.truncf %3 : vector<16x128xf32> to vector<16x128xbf16>
    %cst = arith.constant dense<0.000000e+00> : vector<16x384xf32>
    %10 = tpu.matmul %9, %6, %cst {dimension_numbers = #tpu.dot_dimension_numbers<[1], [0], [0], [1], [0, 0, 1, 1], [], []>} : vector<16x128xbf16>, vector<128x384xbf16>, vector<16x384xf32> -> vector<16x384xf32>
    %11 = vector.broadcast %8 : vector<1x384xf32> to vector<16x384xf32>
    %12 = arith.addf %10, %11 : vector<16x384xf32>
    %13 = vector.extract_strided_slice %12 {offsets = [0, 0], sizes = [16, 128], strides = [1, 1]} : vector<16x384xf32> to vector<16x128xf32>
    %14 = vector.extract_strided_slice %12 {offsets = [0, 128], sizes = [16, 128], strides = [1, 1]} : vector<16x384xf32> to vector<16x128xf32>
    %15 = arith.truncf %14 : vector<16x128xf32> to vector<16x128xbf16>
    %16 = vector.extract_strided_slice %12 {offsets = [0, 256], sizes = [16, 128], strides = [1, 1]} : vector<16x384xf32> to vector<16x128xf32>
    %17 = tpu.iota {dimensions = array<i32: 1>} : vector<1x128xi32>
    %cst_10 = arith.constant 0.000000e+00 : f32
    %18 = vector.broadcast %cst_10 : f32 to vector<16x128xf32>
    %c0_i32_11 = arith.constant 0 : i32
    %19 = vector.broadcast %c0_i32_11 : i32 to vector<1x128xi32>
    %20 = arith.cmpi sge, %17, %19 : vector<1x128xi32>
    %c64_i32 = arith.constant 64 : i32
    %21 = vector.broadcast %c64_i32 : i32 to vector<1x128xi32>
    %22 = arith.cmpi slt, %17, %21 : vector<1x128xi32>
    %23 = arith.andi %20, %22 : vector<1x128xi1>
    %24 = arith.extui %23 : vector<1x128xi1> to vector<1x128xi32>
    %25 = arith.sitofp %24 : vector<1x128xi32> to vector<1x128xf32>
    %26 = vector.broadcast %25 : vector<1x128xf32> to vector<16x128xf32>
    %27 = arith.mulf %13, %26 : vector<16x128xf32>
    %28 = arith.truncf %27 : vector<16x128xf32> to vector<16x128xbf16>
    %cst_12 = arith.constant dense<0.000000e+00> : vector<16x16xf32>
    %29 = tpu.matmul %28, %15, %cst_12 {dimension_numbers = #tpu.dot_dimension_numbers<[1], [1], [0], [0], [0, 0, 1, 0], [], []>} : vector<16x128xbf16>, vector<16x128xbf16>, vector<16x16xf32> -> vector<16x16xf32>
    %cst_13 = arith.constant 1.250000e-01 : f32
    %30 = vector.broadcast %cst_13 : f32 to vector<16x16xf32>
    %31 = arith.mulf %29, %30 : vector<16x16xf32>
    %32 = arith.addf %31, %4 : vector<16x16xf32>
    %cst_14 = arith.constant dense<0xFF800000> : vector<16xf32>
    %33 = vector.multi_reduction <maximumf>, %32, %cst_14 [1] : vector<16x16xf32> to vector<16xf32>
    %34 = vector.shape_cast %33 : vector<16xf32> to vector<16x1xf32>
    %35 = vector.broadcast %34 : vector<16x1xf32> to vector<16x16xf32>
    %36 = arith.subf %32, %35 : vector<16x16xf32>
    %37 = math.exp %36 : vector<16x16xf32>
    %cst_15 = arith.constant dense<0.000000e+00> : vector<16xf32>
    %38 = vector.multi_reduction <add>, %37, %cst_15 [1] : vector<16x16xf32> to vector<16xf32>
    %39 = vector.shape_cast %38 : vector<16xf32> to vector<16x1xf32>
    %40 = tpu.reciprocal %39 {approx = true} : vector<16x1xf32> -> vector<16x1xf32>
    %41 = vector.broadcast %40 : vector<16x1xf32> to vector<16x16xf32>
    %42 = arith.mulf %37, %41 : vector<16x16xf32>
    %43 = vector.broadcast %25 : vector<1x128xf32> to vector<16x128xf32>
    %44 = arith.mulf %16, %43 : vector<16x128xf32>
    %45 = arith.truncf %44 : vector<16x128xf32> to vector<16x128xbf16>
    %46 = arith.truncf %42 : vector<16x16xf32> to vector<16x16xbf16>
    %cst_16 = arith.constant dense<0.000000e+00> : vector<16x128xf32>
    %47 = tpu.matmul %46, %45, %cst_16 {dimension_numbers = #tpu.dot_dimension_numbers<[1], [0], [0], [1], [0, 0, 1, 1], [], []>} : vector<16x16xbf16>, vector<16x128xbf16>, vector<16x128xf32> -> vector<16x128xf32>
    %48 = arith.addf %18, %47 : vector<16x128xf32>
    %c64_i32_17 = arith.constant 64 : i32
    %49 = vector.broadcast %c64_i32_17 : i32 to vector<1x128xi32>
    %50 = arith.cmpi sge, %17, %49 : vector<1x128xi32>
    %c128_i32 = arith.constant 128 : i32
    %51 = vector.broadcast %c128_i32 : i32 to vector<1x128xi32>
    %52 = arith.cmpi slt, %17, %51 : vector<1x128xi32>
    %53 = arith.andi %50, %52 : vector<1x128xi1>
    %54 = arith.extui %53 : vector<1x128xi1> to vector<1x128xi32>
    %55 = arith.sitofp %54 : vector<1x128xi32> to vector<1x128xf32>
    %56 = vector.broadcast %55 : vector<1x128xf32> to vector<16x128xf32>
    %57 = arith.mulf %13, %56 : vector<16x128xf32>
    %58 = arith.truncf %57 : vector<16x128xf32> to vector<16x128xbf16>
    %cst_18 = arith.constant dense<0.000000e+00> : vector<16x16xf32>
    %59 = tpu.matmul %58, %15, %cst_18 {dimension_numbers = #tpu.dot_dimension_numbers<[1], [1], [0], [0], [0, 0, 1, 0], [], []>} : vector<16x128xbf16>, vector<16x128xbf16>, vector<16x16xf32> -> vector<16x16xf32>
    %cst_19 = arith.constant 1.250000e-01 : f32
    %60 = vector.broadcast %cst_19 : f32 to vector<16x16xf32>
    %61 = arith.mulf %59, %60 : vector<16x16xf32>
    %62 = arith.addf %61, %4 : vector<16x16xf32>
    %cst_20 = arith.constant dense<0xFF800000> : vector<16xf32>
    %63 = vector.multi_reduction <maximumf>, %62, %cst_20 [1] : vector<16x16xf32> to vector<16xf32>
    %64 = vector.shape_cast %63 : vector<16xf32> to vector<16x1xf32>
    %65 = vector.broadcast %64 : vector<16x1xf32> to vector<16x16xf32>
    %66 = arith.subf %62, %65 : vector<16x16xf32>
    %67 = math.exp %66 : vector<16x16xf32>
    %cst_21 = arith.constant dense<0.000000e+00> : vector<16xf32>
    %68 = vector.multi_reduction <add>, %67, %cst_21 [1] : vector<16x16xf32> to vector<16xf32>
    %69 = vector.shape_cast %68 : vector<16xf32> to vector<16x1xf32>
    %70 = tpu.reciprocal %69 {approx = true} : vector<16x1xf32> -> vector<16x1xf32>
    %71 = vector.broadcast %70 : vector<16x1xf32> to vector<16x16xf32>
    %72 = arith.mulf %67, %71 : vector<16x16xf32>
    %73 = vector.broadcast %55 : vector<1x128xf32> to vector<16x128xf32>
    %74 = arith.mulf %16, %73 : vector<16x128xf32>
    %75 = arith.truncf %74 : vector<16x128xf32> to vector<16x128xbf16>
    %76 = arith.truncf %72 : vector<16x16xf32> to vector<16x16xbf16>
    %cst_22 = arith.constant dense<0.000000e+00> : vector<16x128xf32>
    %77 = tpu.matmul %76, %75, %cst_22 {dimension_numbers = #tpu.dot_dimension_numbers<[1], [0], [0], [1], [0, 0, 1, 1], [], []>} : vector<16x16xbf16>, vector<16x128xbf16>, vector<16x128xf32> -> vector<16x128xf32>
    %78 = arith.addf %48, %77 : vector<16x128xf32>
    %c0_23 = arith.constant 0 : index
    %c0_24 = arith.constant 0 : index
    %c0_25 = arith.constant 0 : index
    %79 = vector.load %arg7[%c0_23, %c0_24, %c0_25] : memref<1x128x128xbf16, #tpu.memory_space<vmem>>, vector<1x128x128xbf16>
    %80 = vector.shape_cast %79 : vector<1x128x128xbf16> to vector<128x128xbf16>
    %c0_26 = arith.constant 0 : index
    %c0_27 = arith.constant 0 : index
    %c0_28 = arith.constant 0 : index
    %81 = vector.load %arg8[%c0_26, %c0_27, %c0_28] : memref<1x1x128xf32, #tpu.memory_space<vmem>>, vector<1x1x128xf32>
    %82 = vector.shape_cast %81 : vector<1x1x128xf32> to vector<1x128xf32>
    %83 = arith.truncf %78 : vector<16x128xf32> to vector<16x128xbf16>
    %cst_29 = arith.constant dense<0.000000e+00> : vector<16x128xf32>
    %84 = tpu.matmul %83, %80, %cst_29 {dimension_numbers = #tpu.dot_dimension_numbers<[1], [0], [0], [1], [0, 0, 1, 1], [], []>} : vector<16x128xbf16>, vector<128x128xbf16>, vector<16x128xf32> -> vector<16x128xf32>
    %85 = vector.broadcast %82 : vector<1x128xf32> to vector<16x128xf32>
    %86 = arith.addf %84, %85 : vector<16x128xf32>
    %87 = arith.addf %86, %3 : vector<16x128xf32>
    %c0_30 = arith.constant 0 : index
    %c0_31 = arith.constant 0 : index
    %c0_32 = arith.constant 0 : index
    %88 = vector.load %arg9[%c0_30, %c0_31, %c0_32] : memref<1x1x128xf32, #tpu.memory_space<vmem>>, vector<1x1x128xf32>
    %89 = vector.shape_cast %88 : vector<1x1x128xf32> to vector<1x128xf32>
    %c0_33 = arith.constant 0 : index
    %c0_34 = arith.constant 0 : index
    %c0_35 = arith.constant 0 : index
    %90 = vector.load %arg10[%c0_33, %c0_34, %c0_35] : memref<1x1x128xf32, #tpu.memory_space<vmem>>, vector<1x1x128xf32>
    %91 = vector.shape_cast %90 : vector<1x1x128xf32> to vector<1x128xf32>
    %cst_36 = arith.constant dense<0.000000e+00> : vector<16xf32>
    %92 = vector.multi_reduction <add>, %87, %cst_36 [1] : vector<16x128xf32> to vector<16xf32>
    %93 = vector.shape_cast %92 : vector<16xf32> to vector<16x1xf32>
    %cst_37 = arith.constant 1.280000e+02 : f32
    %94 = vector.broadcast %cst_37 : f32 to vector<16x1xf32>
    %95 = arith.divf %93, %94 : vector<16x1xf32>
    %96 = vector.broadcast %95 : vector<16x1xf32> to vector<16x128xf32>
    %97 = arith.subf %87, %96 : vector<16x128xf32>
    %98 = arith.mulf %97, %97 : vector<16x128xf32>
    %cst_38 = arith.constant dense<0.000000e+00> : vector<16xf32>
    %99 = vector.multi_reduction <add>, %98, %cst_38 [1] : vector<16x128xf32> to vector<16xf32>
    %100 = vector.shape_cast %99 : vector<16xf32> to vector<16x1xf32>
    %cst_39 = arith.constant 1.280000e+02 : f32
    %101 = vector.broadcast %cst_39 : f32 to vector<16x1xf32>
    %102 = arith.divf %100, %101 : vector<16x1xf32>
    %cst_40 = arith.constant 9.99999996E-13 : f32
    %103 = vector.broadcast %cst_40 : f32 to vector<16x1xf32>
    %104 = arith.addf %102, %103 : vector<16x1xf32>
    %105 = math.rsqrt %104 : vector<16x1xf32>
    %106 = vector.broadcast %105 : vector<16x1xf32> to vector<16x128xf32>
    %107 = arith.mulf %97, %106 : vector<16x128xf32>
    %108 = vector.broadcast %89 : vector<1x128xf32> to vector<16x128xf32>
    %109 = arith.mulf %107, %108 : vector<16x128xf32>
    %110 = vector.broadcast %91 : vector<1x128xf32> to vector<16x128xf32>
    %111 = arith.addf %109, %110 : vector<16x128xf32>
    %c0_41 = arith.constant 0 : index
    %c0_42 = arith.constant 0 : index
    %c0_43 = arith.constant 0 : index
    %112 = vector.load %arg11[%c0_41, %c0_42, %c0_43] : memref<1x128x256xbf16, #tpu.memory_space<vmem>>, vector<1x128x256xbf16>
    %113 = vector.shape_cast %112 : vector<1x128x256xbf16> to vector<128x256xbf16>
    %c0_44 = arith.constant 0 : index
    %c0_45 = arith.constant 0 : index
    %c0_46 = arith.constant 0 : index
    %114 = vector.load %arg12[%c0_44, %c0_45, %c0_46] : memref<1x1x256xf32, #tpu.memory_space<vmem>>, vector<1x1x256xf32>
    %115 = vector.shape_cast %114 : vector<1x1x256xf32> to vector<1x256xf32>
    %116 = arith.truncf %111 : vector<16x128xf32> to vector<16x128xbf16>
    %cst_47 = arith.constant dense<0.000000e+00> : vector<16x256xf32>
    %117 = tpu.matmul %116, %113, %cst_47 {dimension_numbers = #tpu.dot_dimension_numbers<[1], [0], [0], [1], [0, 0, 1, 1], [], []>} : vector<16x128xbf16>, vector<128x256xbf16>, vector<16x256xf32> -> vector<16x256xf32>
    %118 = vector.broadcast %115 : vector<1x256xf32> to vector<16x256xf32>
    %119 = arith.addf %117, %118 : vector<16x256xf32>
    %120 = arith.mulf %119, %119 : vector<16x256xf32>
    %121 = arith.mulf %119, %120 : vector<16x256xf32>
    %cst_48 = arith.constant 4.471500e-02 : f32
    %122 = vector.broadcast %cst_48 : f32 to vector<16x256xf32>
    %123 = arith.mulf %122, %121 : vector<16x256xf32>
    %124 = arith.addf %119, %123 : vector<16x256xf32>
    %cst_49 = arith.constant 0.797884583 : f32
    %125 = vector.broadcast %cst_49 : f32 to vector<16x256xf32>
    %126 = arith.mulf %125, %124 : vector<16x256xf32>
    %127 = math.tanh %126 : vector<16x256xf32>
    %cst_50 = arith.constant 1.000000e+00 : f32
    %128 = vector.broadcast %cst_50 : f32 to vector<16x256xf32>
    %129 = arith.addf %128, %127 : vector<16x256xf32>
    %cst_51 = arith.constant 5.000000e-01 : f32
    %130 = vector.broadcast %cst_51 : f32 to vector<16x256xf32>
    %131 = arith.mulf %130, %129 : vector<16x256xf32>
    %132 = arith.mulf %119, %131 : vector<16x256xf32>
    %c0_52 = arith.constant 0 : index
    %c0_53 = arith.constant 0 : index
    %c0_54 = arith.constant 0 : index
    %133 = vector.load %arg13[%c0_52, %c0_53, %c0_54] : memref<1x256x128xbf16, #tpu.memory_space<vmem>>, vector<1x256x128xbf16>
    %134 = vector.shape_cast %133 : vector<1x256x128xbf16> to vector<256x128xbf16>
    %c0_55 = arith.constant 0 : index
    %c0_56 = arith.constant 0 : index
    %c0_57 = arith.constant 0 : index
    %135 = vector.load %arg14[%c0_55, %c0_56, %c0_57] : memref<1x1x128xf32, #tpu.memory_space<vmem>>, vector<1x1x128xf32>
    %136 = vector.shape_cast %135 : vector<1x1x128xf32> to vector<1x128xf32>
    %137 = arith.truncf %132 : vector<16x256xf32> to vector<16x256xbf16>
    %cst_58 = arith.constant dense<0.000000e+00> : vector<16x128xf32>
    %138 = tpu.matmul %137, %134, %cst_58 {dimension_numbers = #tpu.dot_dimension_numbers<[1], [0], [0], [1], [0, 0, 1, 1], [], []>} : vector<16x256xbf16>, vector<256x128xbf16>, vector<16x128xf32> -> vector<16x128xf32>
    %139 = vector.broadcast %136 : vector<1x128xf32> to vector<16x128xf32>
    %140 = arith.addf %138, %139 : vector<16x128xf32>
    %141 = arith.addf %140, %111 : vector<16x128xf32>
    %c0_59 = arith.constant 0 : index
    %c0_60 = arith.constant 0 : index
    %c0_61 = arith.constant 0 : index
    %142 = vector.load %arg15[%c0_59, %c0_60, %c0_61] : memref<1x1x128xf32, #tpu.memory_space<vmem>>, vector<1x1x128xf32>
    %143 = vector.shape_cast %142 : vector<1x1x128xf32> to vector<1x128xf32>
    %c0_62 = arith.constant 0 : index
    %c0_63 = arith.constant 0 : index
    %c0_64 = arith.constant 0 : index
    %144 = vector.load %arg16[%c0_62, %c0_63, %c0_64] : memref<1x1x128xf32, #tpu.memory_space<vmem>>, vector<1x1x128xf32>
    %145 = vector.shape_cast %144 : vector<1x1x128xf32> to vector<1x128xf32>
    %cst_65 = arith.constant dense<0.000000e+00> : vector<16xf32>
    %146 = vector.multi_reduction <add>, %141, %cst_65 [1] : vector<16x128xf32> to vector<16xf32>
    %147 = vector.shape_cast %146 : vector<16xf32> to vector<16x1xf32>
    %cst_66 = arith.constant 1.280000e+02 : f32
    %148 = vector.broadcast %cst_66 : f32 to vector<16x1xf32>
    %149 = arith.divf %147, %148 : vector<16x1xf32>
    %150 = vector.broadcast %149 : vector<16x1xf32> to vector<16x128xf32>
    %151 = arith.subf %141, %150 : vector<16x128xf32>
    %152 = arith.mulf %151, %151 : vector<16x128xf32>
    %cst_67 = arith.constant dense<0.000000e+00> : vector<16xf32>
    %153 = vector.multi_reduction <add>, %152, %cst_67 [1] : vector<16x128xf32> to vector<16xf32>
    %154 = vector.shape_cast %153 : vector<16xf32> to vector<16x1xf32>
    %cst_68 = arith.constant 1.280000e+02 : f32
    %155 = vector.broadcast %cst_68 : f32 to vector<16x1xf32>
    %156 = arith.divf %154, %155 : vector<16x1xf32>
    %cst_69 = arith.constant 9.99999996E-13 : f32
    %157 = vector.broadcast %cst_69 : f32 to vector<16x1xf32>
    %158 = arith.addf %156, %157 : vector<16x1xf32>
    %159 = math.rsqrt %158 : vector<16x1xf32>
    %160 = vector.broadcast %159 : vector<16x1xf32> to vector<16x128xf32>
    %161 = arith.mulf %151, %160 : vector<16x128xf32>
    %162 = vector.broadcast %143 : vector<1x128xf32> to vector<16x128xf32>
    %163 = arith.mulf %161, %162 : vector<16x128xf32>
    %164 = vector.broadcast %145 : vector<1x128xf32> to vector<16x128xf32>
    %165 = arith.addf %163, %164 : vector<16x128xf32>
    %c0_70 = arith.constant 0 : index
    %c0_71 = arith.constant 0 : index
    %166 = vector.load %arg22[%c0_70, %c0_71] : memref<16x128xf32, #tpu.memory_space<vmem>>, vector<16x128xf32>
    tpu.vector_store %arg22[%c0_70, %c0_71], %165 {strides = array<i32>} : memref<16x128xf32, #tpu.memory_space<vmem>>, vector<16x128xf32>,
    %c1_i32 = arith.constant 1 : i32
    %167 = arith.cmpi eq, %arg0, %c1_i32 : i32
    %168 = arith.extui %167 : i1 to i32
    %c0_i32_72 = arith.constant 0 : i32
    %169 = arith.cmpi ne, %168, %c0_i32_72 : i32
    scf.if %169 {
      %c0_73 = arith.constant 0 : index
      %c0_74 = arith.constant 0 : index
      %170 = vector.load %arg17[%c0_73, %c0_74] : memref<128x128xbf16, #tpu.memory_space<vmem>>, vector<128x128xbf16>
      %c0_75 = arith.constant 0 : index
      %c0_76 = arith.constant 0 : index
      %171 = vector.load %arg18[%c0_75, %c0_76] : memref<1x128xf32, #tpu.memory_space<vmem>>, vector<1x128xf32>
      %172 = arith.truncf %165 : vector<16x128xf32> to vector<16x128xbf16>
      %cst_77 = arith.constant dense<0.000000e+00> : vector<16x128xf32>
      %173 = tpu.matmul %172, %170, %cst_77 {dimension_numbers = #tpu.dot_dimension_numbers<[1], [0], [0], [1], [0, 0, 1, 1], [], []>} : vector<16x128xbf16>, vector<128x128xbf16>, vector<16x128xf32> -> vector<16x128xf32>
      %174 = vector.broadcast %171 : vector<1x128xf32> to vector<16x128xf32>
      %175 = arith.addf %173, %174 : vector<16x128xf32>
      %176 = math.tanh %175 : vector<16x128xf32>
      %c0_78 = arith.constant 0 : index
      %c0_79 = arith.constant 0 : index
      %177 = vector.load %arg19[%c0_78, %c0_79] : memref<128x128xbf16, #tpu.memory_space<vmem>>, vector<128x128xbf16>
      %c0_80 = arith.constant 0 : index
      %c0_81 = arith.constant 0 : index
      %178 = vector.load %arg20[%c0_80, %c0_81] : memref<1x128xf32, #tpu.memory_space<vmem>>, vector<1x128xf32>
      %179 = arith.truncf %176 : vector<16x128xf32> to vector<16x128xbf16>
      %cst_82 = arith.constant dense<0.000000e+00> : vector<16x128xf32>
      %180 = tpu.matmul %179, %177, %cst_82 {dimension_numbers = #tpu.dot_dimension_numbers<[1], [0], [0], [1], [0, 0, 1, 1], [], []>} : vector<16x128xbf16>, vector<128x128xbf16>, vector<16x128xf32> -> vector<16x128xf32>
      %181 = vector.broadcast %178 : vector<1x128xf32> to vector<16x128xf32>
      %182 = arith.addf %180, %181 : vector<16x128xf32>
      %c0_83 = arith.constant 0 : index
      %c0_84 = arith.constant 0 : index
      %183 = vector.load %arg21[%c0_83, %c0_84] : memref<16x128xf32, #tpu.memory_space<vmem>>, vector<16x128xf32>
      tpu.vector_store %arg21[%c0_83, %c0_84], %182 {strides = array<i32>} : memref<16x128xf32, #tpu.memory_space<vmem>>, vector<16x128xf32>,
    } else {
    }
    return
  }
  func.func @transform_0(%arg0: i32) -> (i32, i32) {
    %c0_i32 = arith.constant 0 : i32
    %c0_i32_0 = arith.constant 0 : i32
    %c0_i32_1 = arith.constant 0 : i32
    return %c0_i32, %c0_i32_0 : i32, i32
  }
  func.func @transform_1(%arg0: i32) -> (i32, i32) {
    %c0_i32 = arith.constant 0 : i32
    %c0_i32_0 = arith.constant 0 : i32
    %c0_i32_1 = arith.constant 0 : i32
    return %c0_i32, %c0_i32_0 : i32, i32
  }
  func.func @transform_2(%arg0: i32) -> (i32, i32) {
    %c0_i32 = arith.constant 0 : i32
    %c0_i32_0 = arith.constant 0 : i32
    %c0_i32_1 = arith.constant 0 : i32
    return %c0_i32, %c0_i32_0 : i32, i32
  }
  func.func @transform_3(%arg0: i32) -> (i32, i32) {
    %c0_i32 = arith.constant 0 : i32
    %c0_i32_0 = arith.constant 0 : i32
    %c0_i32_1 = arith.constant 0 : i32
    return %c0_i32, %c0_i32_0 : i32, i32
  }
  func.func @transform_4(%arg0: i32) -> (i32, i32, i32) {
    %c0_i32 = arith.constant 0 : i32
    %c0_i32_0 = arith.constant 0 : i32
    %c0_i32_1 = arith.constant 0 : i32
    return %arg0, %c0_i32, %c0_i32_0 : i32, i32, i32
  }
  func.func @transform_5(%arg0: i32) -> (i32, i32, i32) {
    %c0_i32 = arith.constant 0 : i32
    %c0_i32_0 = arith.constant 0 : i32
    %c0_i32_1 = arith.constant 0 : i32
    return %arg0, %c0_i32, %c0_i32_0 : i32, i32, i32
  }
  func.func @transform_6(%arg0: i32) -> (i32, i32, i32) {
    %c0_i32 = arith.constant 0 : i32
    %c0_i32_0 = arith.constant 0 : i32
    %c0_i32_1 = arith.constant 0 : i32
    return %arg0, %c0_i32, %c0_i32_0 : i32, i32, i32
  }
  func.func @transform_7(%arg0: i32) -> (i32, i32, i32) {
    %c0_i32 = arith.constant 0 : i32
    %c0_i32_0 = arith.constant 0 : i32
    %c0_i32_1 = arith.constant 0 : i32
    return %arg0, %c0_i32, %c0_i32_0 : i32, i32, i32
  }
  func.func @transform_8(%arg0: i32) -> (i32, i32, i32) {
    %c0_i32 = arith.constant 0 : i32
    %c0_i32_0 = arith.constant 0 : i32
    %c0_i32_1 = arith.constant 0 : i32
    return %arg0, %c0_i32, %c0_i32_0 : i32, i32, i32
  }
  func.func @transform_9(%arg0: i32) -> (i32, i32, i32) {
    %c0_i32 = arith.constant 0 : i32
    %c0_i32_0 = arith.constant 0 : i32
    %c0_i32_1 = arith.constant 0 : i32
    return %arg0, %c0_i32, %c0_i32_0 : i32, i32, i32
  }
  func.func @transform_10(%arg0: i32) -> (i32, i32, i32) {
    %c0_i32 = arith.constant 0 : i32
    %c0_i32_0 = arith.constant 0 : i32
    %c0_i32_1 = arith.constant 0 : i32
    return %arg0, %c0_i32, %c0_i32_0 : i32, i32, i32
  }
  func.func @transform_11(%arg0: i32) -> (i32, i32, i32) {
    %c0_i32 = arith.constant 0 : i32
    %c0_i32_0 = arith.constant 0 : i32
    %c0_i32_1 = arith.constant 0 : i32
    return %arg0, %c0_i32, %c0_i32_0 : i32, i32, i32
  }
  func.func @transform_12(%arg0: i32) -> (i32, i32, i32) {
    %c0_i32 = arith.constant 0 : i32
    %c0_i32_0 = arith.constant 0 : i32
    %c0_i32_1 = arith.constant 0 : i32
    return %arg0, %c0_i32, %c0_i32_0 : i32, i32, i32
  }
  func.func @transform_13(%arg0: i32) -> (i32, i32, i32) {
    %c0_i32 = arith.constant 0 : i32
    %c0_i32_0 = arith.constant 0 : i32
    %c0_i32_1 = arith.constant 0 : i32
    return %arg0, %c0_i32, %c0_i32_0 : i32, i32, i32
  }
  func.func @transform_14(%arg0: i32) -> (i32, i32, i32) {
    %c0_i32 = arith.constant 0 : i32
    %c0_i32_0 = arith.constant 0 : i32
    %c0_i32_1 = arith.constant 0 : i32
    return %arg0, %c0_i32, %c0_i32_0 : i32, i32, i32
  }
  func.func @transform_15(%arg0: i32) -> (i32, i32, i32) {
    %c0_i32 = arith.constant 0 : i32
    %c0_i32_0 = arith.constant 0 : i32
    %c0_i32_1 = arith.constant 0 : i32
    return %arg0, %c0_i32, %c0_i32_0 : i32, i32, i32
  }
  func.func @transform_16(%arg0: i32) -> (i32, i32) {
    %c0_i32 = arith.constant 0 : i32
    %c0_i32_0 = arith.constant 0 : i32
    %c0_i32_1 = arith.constant 0 : i32
    return %c0_i32, %c0_i32_0 : i32, i32
  }
  func.func @transform_17(%arg0: i32) -> (i32, i32) {
    %c0_i32 = arith.constant 0 : i32
    %c0_i32_0 = arith.constant 0 : i32
    %c0_i32_1 = arith.constant 0 : i32
    return %c0_i32, %c0_i32_0 : i32, i32
  }
  func.func @transform_18(%arg0: i32) -> (i32, i32) {
    %c0_i32 = arith.constant 0 : i32
    %c0_i32_0 = arith.constant 0 : i32
    %c0_i32_1 = arith.constant 0 : i32
    return %c0_i32, %c0_i32_0 : i32, i32
  }
  func.func @transform_19(%arg0: i32) -> (i32, i32) {
    %c0_i32 = arith.constant 0 : i32
    %c0_i32_0 = arith.constant 0 : i32
    %c0_i32_1 = arith.constant 0 : i32
    return %c0_i32, %c0_i32_0 : i32, i32
  }
  func.func @transform_20(%arg0: i32) -> (i32, i32) {
    %c0_i32 = arith.constant 0 : i32
    %c0_i32_0 = arith.constant 0 : i32
    %c0_i32_1 = arith.constant 0 : i32
    return %c0_i32, %c0_i32_0 : i32, i32
  }
}

</mosaic_0001>

<llo_original>
// kernel: tpu_custom_call.1
$region0: #{tpu_custom_call.1}
  #allocation0 [shape = 'u32[]', space=smem, size = 0x4, offset = 0x4, fixed_abs, tag = 'smem constant byte address 0x4 - core index']
  #allocation1 [shape = 'u32[144,128]{1,0:T(1,128)}', space=vmem, size = 0x12000, scoped, tag = 'internal scratch']
  #allocation2 [shape = 'f32[16,128]{1,0:T(8,128)}', space=vmem, size = 0x2000, scoped, tag = 'scratch operand']
  %s0 = inlined_call_operand.hbm [shape: f32[16,128], index: 0, kind: input, shape index: {}]
  %s1 = inlined_call_operand.hbm [shape: f32[16,16], index: 1, kind: input, shape index: {}]
  %s2 = inlined_call_operand.hbm [shape: f32[1,128], index: 2, kind: input, shape index: {}]
  %s3 = inlined_call_operand.hbm [shape: f32[1,128], index: 3, kind: input, shape index: {}]
  %s4 = inlined_call_operand.hbm [shape: bf16[2,128,384], index: 4, kind: input, shape index: {}]
  %s5 = inlined_call_operand.hbm [shape: f32[2,1,384], index: 5, kind: input, shape index: {}]
  %s6 = inlined_call_operand.hbm [shape: bf16[2,128,128], index: 6, kind: input, shape index: {}]
  %s7 = inlined_call_operand.hbm [shape: f32[2,1,128], index: 7, kind: input, shape index: {}]
  %s8 = inlined_call_operand.hbm [shape: f32[2,1,128], index: 8, kind: input, shape index: {}]
  %s9 = inlined_call_operand.hbm [shape: f32[2,1,128], index: 9, kind: input, shape index: {}]
  %s10 = inlined_call_operand.hbm [shape: bf16[2,128,256], index: 10, kind: input, shape index: {}]
  %s11 = inlined_call_operand.vmem [shape: f32[2,1,256], index: 11, kind: input, shape index: {}]
  %s12 = inlined_call_operand.hbm [shape: bf16[2,256,128], index: 12, kind: input, shape index: {}]
  %s13 = inlined_call_operand.hbm [shape: f32[2,1,128], index: 13, kind: input, shape index: {}]
  %s14 = inlined_call_operand.hbm [shape: f32[2,1,128], index: 14, kind: input, shape index: {}]
  %s15 = inlined_call_operand.hbm [shape: f32[2,1,128], index: 15, kind: input, shape index: {}]
  %s16 = inlined_call_operand.hbm [shape: bf16[128,128], index: 16, kind: input, shape index: {}]
  %s17 = inlined_call_operand.hbm [shape: f32[1,128], index: 17, kind: input, shape index: {}]
  %s18 = inlined_call_operand.vmem [shape: bf16[128,128], index: 18, kind: input, shape index: {}]
  %s19 = inlined_call_operand.vmem [shape: f32[1,128], index: 19, kind: input, shape index: {}]
  %s20 = inlined_call_operand.hbm [shape: f32[16,128], index: 20, kind: output, shape index: {}]
  %s21 = sld [smem:[#allocation0]]
  $region189: #{tpu_custom_call.1} parent=0
    _
  %s23 = ssub.s32 1, %s21
  %s24 = scalar_select 0, %s23, %s21
  $region1: #{tpu_custom_call.1} parent=0
    #allocation3 [shape = 'u8[8192]{0}', space=vmem, size = 0x2000, scoped, tag = 'input window, operand 0, single buffered']
    #allocation4 [shape = 's32[2]{0}', space=sflag, size = 0x8, scoped, tag = 'scoped memory for tpu_custom_call.1']
    #allocation5 [shape = 's32[2]{0}', space=sflag, size = 0x8, scoped, tag = 'scoped memory for tpu_custom_call.1']
    #allocation6 [shape = 'u8[8192]{0}', space=vmem, size = 0x2000, scoped, tag = 'input window, operand 1, single buffered']
    #allocation7 [shape = 's32[1]{0}', space=sflag, size = 0x4, scoped, tag = 'scoped memory for tpu_custom_call.1']
    #allocation8 [shape = 'u8[512]{0}', space=vmem, size = 0x400, scoped, tag = 'input window, operand 2, single buffered']
    #allocation9 [shape = 'u8[512]{0}', space=vmem, size = 0x400, scoped, tag = 'input window, operand 3, single buffered']
    #allocation10 [shape = 's32[1]{0}', space=sflag, size = 0x4, scoped, tag = 'scoped memory for tpu_custom_call.1']
    #allocation11 [shape = 'u8[196608]{0}', space=vmem, size = 0x30000, scoped, tag = 'input window, operand 4']
    #allocation12 [shape = 'u8[3072]{0}', space=vmem, size = 0xc00, scoped, tag = 'input window, operand 5']
    #allocation13 [shape = 'u8[65536]{0}', space=vmem, size = 0x10000, scoped, tag = 'input window, operand 6']
    #allocation14 [shape = 'u8[1024]{0}', space=vmem, size = 0x400, scoped, tag = 'input window, operand 7']
    #allocation15 [shape = 'u8[1024]{0}', space=vmem, size = 0x400, scoped, tag = 'input window, operand 8']
    #allocation16 [shape = 'u8[1024]{0}', space=vmem, size = 0x400, scoped, tag = 'input window, operand 9']
    #allocation17 [shape = 'u8[131072]{0}', space=vmem, size = 0x20000, scoped, tag = 'input window, operand 10']
    #allocation18 [shape = 'u8[131072]{0}', space=vmem, size = 0x20000, scoped, tag = 'input window, operand 12']
    #allocation19 [shape = 'u8[1024]{0}', space=vmem, size = 0x400, scoped, tag = 'input window, operand 13']
    #allocation20 [shape = 'u8[1024]{0}', space=vmem, size = 0x400, scoped, tag = 'input window, operand 14']
    #allocation21 [shape = 'u8[1024]{0}', space=vmem, size = 0x400, scoped, tag = 'input window, operand 15']
    #allocation22 [shape = 'u8[32768]{0}', space=vmem, size = 0x8000, scoped, tag = 'input window, operand 16, single buffered']
    #allocation23 [shape = 'u8[512]{0}', space=vmem, size = 0x400, scoped, tag = 'input window, operand 17, single buffered']
    #allocation24 [shape = 'u8[8192]{0}', space=vmem, size = 0x2000, scoped, tag = 'output window, operand 0, single buffered']
    %25 = vsyncpa [#allocation4], 0
    %26 = vsyncpa [#allocation7], 0
    %27 = vsyncpa [#allocation10], 0
    %28 = vsyncpa [#allocation5], 0
    loop: start=0, step=1, limit=4
    $region2: #{tpu_custom_call.1} parent=1 // loop_pre_header
      _
    $region3: #{tpu_custom_call.1} parent=1 // loop_header
      %s30 = sphi 0, %s34
      %p31 = scmp.ge.s32.totalorder %s30, 4
      %s38 = sphi 0, %s38
      %s40 = sphi 0, %s38
      %s41 = sphi 0, %s40
      %s55 = sphi 0, %s41
      %s59 = sphi 0, %s59
      %s61 = sphi 0, %s59
      %s62 = sphi 0, %s61
      %s76 = sphi 0, %s62
      %s80 = sphi 0, %s80
      %s82 = sphi 0, %s80
      %s83 = sphi 0, %s82
      %s97 = sphi 0, %s83
      %s101 = sphi 0, %s101
      %s103 = sphi 0, %s101
      %s104 = sphi 0, %s103
      %s118 = sphi 0, %s104
      %s124 = sphi 0, %s126
      %s127 = sphi 0, %s124
      %s128 = sphi 0, %s127
      %s144 = sphi 0, %s128
      %s150 = sphi 0, %s152
      %s153 = sphi 0, %s150
      %s154 = sphi 0, %s153
      %s170 = sphi 0, %s154
      %s176 = sphi 0, %s178
      %s179 = sphi 0, %s176
      %s180 = sphi 0, %s179
      %s196 = sphi 0, %s180
      %s202 = sphi 0, %s204
      %s205 = sphi 0, %s202
      %s206 = sphi 0, %s205
      %s222 = sphi 0, %s206
      %s228 = sphi 0, %s230
      %s231 = sphi 0, %s228
      %s232 = sphi 0, %s231
      %s248 = sphi 0, %s232
      %s254 = sphi 0, %s256
      %s257 = sphi 0, %s254
      %s258 = sphi 0, %s257
      %s274 = sphi 0, %s258
      %s280 = sphi 0, %s282
      %s283 = sphi 0, %s280
      %s284 = sphi 0, %s283
      %s300 = sphi 0, %s284
      %s306 = sphi 0, %s308
      %s309 = sphi 0, %s306
      %s310 = sphi 0, %s309
      %s326 = sphi 0, %s310
      %s332 = sphi 0, %s334
      %s335 = sphi 0, %s332
      %s336 = sphi 0, %s335
      %s352 = sphi 0, %s336
      %s358 = sphi 0, %s360
      %s361 = sphi 0, %s358
      %s362 = sphi 0, %s361
      %s378 = sphi 0, %s362
      %s384 = sphi 0, %s386
      %s387 = sphi 0, %s384
      %s388 = sphi 0, %s387
      %s404 = sphi 0, %s388
      %s410 = sphi 0, %s412
      %s413 = sphi 0, %s410
      %s414 = sphi 0, %s413
      %s430 = sphi 0, %s414
      %s434 = sphi 0, %s434
      %s436 = sphi 0, %s434
      %s437 = sphi 0, %s436
      %s451 = sphi 0, %s437
      %s455 = sphi 0, %s455
      %s457 = sphi 0, %s455
      %s458 = sphi 0, %s457
      %s472 = sphi 0, %s458
      %s476 = sphi 0, %s476
      %s478 = sphi 0, %s476
      %s479 = sphi 0, %s478
      %s493 = sphi 0, %s479
      %s497 = sphi 0, %s497
      %s499 = sphi 0, %s497
      %s500 = sphi 0, %s499
      %s514 = sphi 0, %s500
      %s518 = sphi 0, %s518
      %s520 = sphi 0, %s518
      %s521 = sphi 0, %s520
      %s535 = sphi 0, %s521
    $region4: #{tpu_custom_call.1} parent=1 // loop_header_branch
      %33 = sbr.rel (%p31) target = $region8
    $region5: #{tpu_custom_call.1} parent=1 // loop_body
      %s35 = ssub.s32 %s30, 1
      %s36 = ssub.s32 %s30, 2
      %s37 = sadd.s32 %s30, 1
      %s39 = sadd.s32 %s38, 1
      %p42 = scmp.eq.s32.totalorder %s30, 1
      %p43 = scmp.ne.s32.totalorder %s38, %s40
      %p44 = scmp.eq.s32.totalorder %s30, 0
      %p45 = por %p43, %p44
      %p46 = scmp.ne.s32.totalorder %s38, %s40
      %p47 = scmp.eq.s32.totalorder %s35, 1
      %p48 = por %p46, %p47
      %p49 = scmp.ne.s32.totalorder %s40, %s41
      %p50 = scmp.eq.s32.totalorder %s35, 0
      %p51 = por %p49, %p50
      %p52 = scmp.ne.s32.totalorder %s40, %s41
      %p53 = scmp.eq.s32.totalorder %s36, 1
      %p54 = por %p52, %p53
      %p56 = scmp.ne.s32.totalorder %s41, %s55
      %p57 = scmp.eq.s32.totalorder %s36, 0
      %p58 = por %p56, %p57
      %s60 = sadd.s32 %s59, 1
      %p63 = scmp.eq.s32.totalorder %s30, 1
      %p64 = scmp.ne.s32.totalorder %s59, %s61
      %p65 = scmp.eq.s32.totalorder %s30, 0
      %p66 = por %p64, %p65
      %p67 = scmp.ne.s32.totalorder %s59, %s61
      %p68 = scmp.eq.s32.totalorder %s35, 1
      %p69 = por %p67, %p68
      %p70 = scmp.ne.s32.totalorder %s61, %s62
      %p71 = scmp.eq.s32.totalorder %s35, 0
      %p72 = por %p70, %p71
      %p73 = scmp.ne.s32.totalorder %s61, %s62
      %p74 = scmp.eq.s32.totalorder %s36, 1
      %p75 = por %p73, %p74
      %p77 = scmp.ne.s32.totalorder %s62, %s76
      %p78 = scmp.eq.s32.totalorder %s36, 0
      %p79 = por %p77, %p78
      %s81 = sadd.s32 %s80, 1
      %p84 = scmp.eq.s32.totalorder %s30, 1
      %p85 = scmp.ne.s32.totalorder %s80, %s82
      %p86 = scmp.eq.s32.totalorder %s30, 0
      %p87 = por %p85, %p86
      %p88 = scmp.ne.s32.totalorder %s80, %s82
      %p89 = scmp.eq.s32.totalorder %s35, 1
      %p90 = por %p88, %p89
      %p91 = scmp.ne.s32.totalorder %s82, %s83
      %p92 = scmp.eq.s32.totalorder %s35, 0
      %p93 = por %p91, %p92
      %p94 = scmp.ne.s32.totalorder %s82, %s83
      %p95 = scmp.eq.s32.totalorder %s36, 1
      %p96 = por %p94, %p95
      %p98 = scmp.ne.s32.totalorder %s83, %s97
      %p99 = scmp.eq.s32.totalorder %s36, 0
      %p100 = por %p98, %p99
      %s102 = sadd.s32 %s101, 1
      %p105 = scmp.eq.s32.totalorder %s30, 1
      %p106 = scmp.ne.s32.totalorder %s101, %s103
      %p107 = scmp.eq.s32.totalorder %s30, 0
      %p108 = por %p106, %p107
      %p109 = scmp.ne.s32.totalorder %s101, %s103
      %p110 = scmp.eq.s32.totalorder %s35, 1
      %p111 = por %p109, %p110
      %p112 = scmp.ne.s32.totalorder %s103, %s104
      %p113 = scmp.eq.s32.totalorder %s35, 0
      %p114 = por %p112, %p113
      %p115 = scmp.ne.s32.totalorder %s103, %s104
      %p116 = scmp.eq.s32.totalorder %s36, 1
      %p117 = por %p115, %p116
      %p119 = scmp.ne.s32.totalorder %s104, %s118
      %p120 = scmp.eq.s32.totalorder %s36, 0
      %p121 = por %p119, %p120
      %s122 = ssub.s32 %s30, %s37
      %p123 = scmp.eq.s32.totalorder %s122, 0
      %s125 = sadd.s32 %s124, 1
      %s126 = scalar_select %p123, %s124, %s125
      %p129 = pneg %p123
      %p130 = scmp.eq.s32.totalorder %s30, 1
      %p131 = por %p129, %p130
      %p132 = scmp.ne.s32.totalorder %s124, %s127
      %p133 = scmp.eq.s32.totalorder %s30, 0
      %p134 = por %p132, %p133
      %p135 = scmp.ne.s32.totalorder %s124, %s127
      %p136 = scmp.eq.s32.totalorder %s35, 1
      %p137 = por %p135, %p136
      %p138 = scmp.ne.s32.totalorder %s127, %s128
      %p139 = scmp.eq.s32.totalorder %s35, 0
      %p140 = por %p138, %p139
      %p141 = scmp.ne.s32.totalorder %s127, %s128
      %p142 = scmp.eq.s32.totalorder %s36, 1
      %p143 = por %p141, %p142
      %p145 = scmp.ne.s32.totalorder %s128, %s144
      %p146 = scmp.eq.s32.totalorder %s36, 0
      %p147 = por %p145, %p146
      %s148 = ssub.s32 %s30, %s37
      %p149 = scmp.eq.s32.totalorder %s148, 0
      %s151 = sadd.s32 %s150, 1
      %s152 = scalar_select %p149, %s150, %s151
      %p155 = pneg %p149
      %p156 = scmp.eq.s32.totalorder %s30, 1
      %p157 = por %p155, %p156
      %p158 = scmp.ne.s32.totalorder %s150, %s153
      %p159 = scmp.eq.s32.totalorder %s30, 0
      %p160 = por %p158, %p159
      %p161 = scmp.ne.s32.totalorder %s150, %s153
      %p162 = scmp.eq.s32.totalorder %s35, 1
      %p163 = por %p161, %p162
      %p164 = scmp.ne.s32.totalorder %s153, %s154
      %p165 = scmp.eq.s32.totalorder %s35, 0
      %p166 = por %p164, %p165
      %p167 = scmp.ne.s32.totalorder %s153, %s154
      %p168 = scmp.eq.s32.totalorder %s36, 1
      %p169 = por %p167, %p168
      %p171 = scmp.ne.s32.totalorder %s154, %s170
      %p172 = scmp.eq.s32.totalorder %s36, 0
      %p173 = por %p171, %p172
      %s174 = ssub.s32 %s30, %s37
      %p175 = scmp.eq.s32.totalorder %s174, 0
      %s177 = sadd.s32 %s176, 1
      %s178 = scalar_select %p175, %s176, %s177
      %p181 = pneg %p175
      %p182 = scmp.eq.s32.totalorder %s30, 1
      %p183 = por %p181, %p182
      %p184 = scmp.ne.s32.totalorder %s176, %s179
      %p185 = scmp.eq.s32.totalorder %s30, 0
      %p186 = por %p184, %p185
      %p187 = scmp.ne.s32.totalorder %s176, %s179
      %p188 = scmp.eq.s32.totalorder %s35, 1
      %p189 = por %p187, %p188
      %p190 = scmp.ne.s32.totalorder %s179, %s180
      %p191 = scmp.eq.s32.totalorder %s35, 0
      %p192 = por %p190, %p191
      %p193 = scmp.ne.s32.totalorder %s179, %s180
      %p194 = scmp.eq.s32.totalorder %s36, 1
      %p195 = por %p193, %p194
      %p197 = scmp.ne.s32.totalorder %s180, %s196
      %p198 = scmp.eq.s32.totalorder %s36, 0
      %p199 = por %p197, %p198
      %s200 = ssub.s32 %s30, %s37
      %p201 = scmp.eq.s32.totalorder %s200, 0
      %s203 = sadd.s32 %s202, 1
      %s204 = scalar_select %p201, %s202, %s203
      %p207 = pneg %p201
      %p208 = scmp.eq.s32.totalorder %s30, 1
      %p209 = por %p207, %p208
      %p210 = scmp.ne.s32.totalorder %s202, %s205
      %p211 = scmp.eq.s32.totalorder %s30, 0
      %p212 = por %p210, %p211
      %p213 = scmp.ne.s32.totalorder %s202, %s205
      %p214 = scmp.eq.s32.totalorder %s35, 1
      %p215 = por %p213, %p214
      %p216 = scmp.ne.s32.totalorder %s205, %s206
      %p217 = scmp.eq.s32.totalorder %s35, 0
      %p218 = por %p216, %p217
      %p219 = scmp.ne.s32.totalorder %s205, %s206
      %p220 = scmp.eq.s32.totalorder %s36, 1
      %p221 = por %p219, %p220
      %p223 = scmp.ne.s32.totalorder %s206, %s222
      %p224 = scmp.eq.s32.totalorder %s36, 0
      %p225 = por %p223, %p224
      %s226 = ssub.s32 %s30, %s37
      %p227 = scmp.eq.s32.totalorder %s226, 0
      %s229 = sadd.s32 %s228, 1
      %s230 = scalar_select %p227, %s228, %s229
      %p233 = pneg %p227
      %p234 = scmp.eq.s32.totalorder %s30, 1
      %p235 = por %p233, %p234
      %p236 = scmp.ne.s32.totalorder %s228, %s231
      %p237 = scmp.eq.s32.totalorder %s30, 0
      %p238 = por %p236, %p237
      %p239 = scmp.ne.s32.totalorder %s228, %s231
      %p240 = scmp.eq.s32.totalorder %s35, 1
      %p241 = por %p239, %p240
      %p242 = scmp.ne.s32.totalorder %s231, %s232
      %p243 = scmp.eq.s32.totalorder %s35, 0
      %p244 = por %p242, %p243
      %p245 = scmp.ne.s32.totalorder %s231, %s232
      %p246 = scmp.eq.s32.totalorder %s36, 1
      %p247 = por %p245, %p246
      %p249 = scmp.ne.s32.totalorder %s232, %s248
      %p250 = scmp.eq.s32.totalorder %s36, 0
      %p251 = por %p249, %p250
      %s252 = ssub.s32 %s30, %s37
      %p253 = scmp.eq.s32.totalorder %s252, 0
      %s255 = sadd.s32 %s254, 1
      %s256 = scalar_select %p253, %s254, %s255
      %p259 = pneg %p253
      %p260 = scmp.eq.s32.totalorder %s30, 1
      %p261 = por %p259, %p260
      %p262 = scmp.ne.s32.totalorder %s254, %s257
      %p263 = scmp.eq.s32.totalorder %s30, 0
      %p264 = por %p262, %p263
      %p265 = scmp.ne.s32.totalorder %s254, %s257
      %p266 = scmp.eq.s32.totalorder %s35, 1
      %p267 = por %p265, %p266
      %p268 = scmp.ne.s32.totalorder %s257, %s258
      %p269 = scmp.eq.s32.totalorder %s35, 0
      %p270 = por %p268, %p269
      %p271 = scmp.ne.s32.totalorder %s257, %s258
      %p272 = scmp.eq.s32.totalorder %s36, 1
      %p273 = por %p271, %p272
      %p275 = scmp.ne.s32.totalorder %s258, %s274
      %p276 = scmp.eq.s32.totalorder %s36, 0
      %p277 = por %p275, %p276
      %s278 = ssub.s32 %s30, %s37
      %p279 = scmp.eq.s32.totalorder %s278, 0
      %s281 = sadd.s32 %s280, 1
      %s282 = scalar_select %p279, %s280, %s281
      %p285 = pneg %p279
      %p286 = scmp.eq.s32.totalorder %s30, 1
      %p287 = por %p285, %p286
      %p288 = scmp.ne.s32.totalorder %s280, %s283
      %p289 = scmp.eq.s32.totalorder %s30, 0
      %p290 = por %p288, %p289
      %p291 = scmp.ne.s32.totalorder %s280, %s283
      %p292 = scmp.eq.s32.totalorder %s35, 1
      %p293 = por %p291, %p292
      %p294 = scmp.ne.s32.totalorder %s283, %s284
      %p295 = scmp.eq.s32.totalorder %s35, 0
      %p296 = por %p294, %p295
      %p297 = scmp.ne.s32.totalorder %s283, %s284
      %p298 = scmp.eq.s32.totalorder %s36, 1
      %p299 = por %p297, %p298
      %p301 = scmp.ne.s32.totalorder %s284, %s300
      %p302 = scmp.eq.s32.totalorder %s36, 0
      %p303 = por %p301, %p302
      %s304 = ssub.s32 %s30, %s37
      %p305 = scmp.eq.s32.totalorder %s304, 0
      %s307 = sadd.s32 %s306, 1
      %s308 = scalar_select %p305, %s306, %s307
      %p311 = pneg %p305
      %p312 = scmp.eq.s32.totalorder %s30, 1
      %p313 = por %p311, %p312
      %p314 = scmp.ne.s32.totalorder %s306, %s309
      %p315 = scmp.eq.s32.totalorder %s30, 0
      %p316 = por %p314, %p315
      %p317 = scmp.ne.s32.totalorder %s306, %s309
      %p318 = scmp.eq.s32.totalorder %s35, 1
      %p319 = por %p317, %p318
      %p320 = scmp.ne.s32.totalorder %s309, %s310
      %p321 = scmp.eq.s32.totalorder %s35, 0
      %p322 = por %p320, %p321
      %p323 = scmp.ne.s32.totalorder %s309, %s310
      %p324 = scmp.eq.s32.totalorder %s36, 1
      %p325 = por %p323, %p324
      %p327 = scmp.ne.s32.totalorder %s310, %s326
      %p328 = scmp.eq.s32.totalorder %s36, 0
      %p329 = por %p327, %p328
      %s330 = ssub.s32 %s30, %s37
      %p331 = scmp.eq.s32.totalorder %s330, 0
      %s333 = sadd.s32 %s332, 1
      %s334 = scalar_select %p331, %s332, %s333
      %p337 = pneg %p331
      %p338 = scmp.eq.s32.totalorder %s30, 1
      %p339 = por %p337, %p338
      %p340 = scmp.ne.s32.totalorder %s332, %s335
      %p341 = scmp.eq.s32.totalorder %s30, 0
      %p342 = por %p340, %p341
      %p343 = scmp.ne.s32.totalorder %s332, %s335
      %p344 = scmp.eq.s32.totalorder %s35, 1
      %p345 = por %p343, %p344
      %p346 = scmp.ne.s32.totalorder %s335, %s336
      %p347 = scmp.eq.s32.totalorder %s35, 0
      %p348 = por %p346, %p347
      %p349 = scmp.ne.s32.totalorder %s335, %s336
      %p350 = scmp.eq.s32.totalorder %s36, 1
      %p351 = por %p349, %p350
      %p353 = scmp.ne.s32.totalorder %s336, %s352
      %p354 = scmp.eq.s32.totalorder %s36, 0
      %p355 = por %p353, %p354
      %s356 = ssub.s32 %s30, %s37
      %p357 = scmp.eq.s32.totalorder %s356, 0
      %s359 = sadd.s32 %s358, 1
      %s360 = scalar_select %p357, %s358, %s359
      %p363 = pneg %p357
      %p364 = scmp.eq.s32.totalorder %s30, 1
      %p365 = por %p363, %p364
      %p366 = scmp.ne.s32.totalorder %s358, %s361
      %p367 = scmp.eq.s32.totalorder %s30, 0
      %p368 = por %p366, %p367
      %p369 = scmp.ne.s32.totalorder %s358, %s361
      %p370 = scmp.eq.s32.totalorder %s35, 1
      %p371 = por %p369, %p370
      %p372 = scmp.ne.s32.totalorder %s361, %s362
      %p373 = scmp.eq.s32.totalorder %s35, 0
      %p374 = por %p372, %p373
      %p375 = scmp.ne.s32.totalorder %s361, %s362
      %p376 = scmp.eq.s32.totalorder %s36, 1
      %p377 = por %p375, %p376
      %p379 = scmp.ne.s32.totalorder %s362, %s378
      %p380 = scmp.eq.s32.totalorder %s36, 0
      %p381 = por %p379, %p380
      %s382 = ssub.s32 %s30, %s37
      %p383 = scmp.eq.s32.totalorder %s382, 0
      %s385 = sadd.s32 %s384, 1
      %s386 = scalar_select %p383, %s384, %s385
      %p389 = pneg %p383
      %p390 = scmp.eq.s32.totalorder %s30, 1
      %p391 = por %p389, %p390
      %p392 = scmp.ne.s32.totalorder %s384, %s387
      %p393 = scmp.eq.s32.totalorder %s30, 0
      %p394 = por %p392, %p393
      %p395 = scmp.ne.s32.totalorder %s384, %s387
      %p396 = scmp.eq.s32.totalorder %s35, 1
      %p397 = por %p395, %p396
      %p398 = scmp.ne.s32.totalorder %s387, %s388
      %p399 = scmp.eq.s32.totalorder %s35, 0
      %p400 = por %p398, %p399
      %p401 = scmp.ne.s32.totalorder %s387, %s388
      %p402 = scmp.eq.s32.totalorder %s36, 1
      %p403 = por %p401, %p402
      %p405 = scmp.ne.s32.totalorder %s388, %s404
      %p406 = scmp.eq.s32.totalorder %s36, 0
      %p407 = por %p405, %p406
      %s408 = ssub.s32 %s30, %s37
      %p409 = scmp.eq.s32.totalorder %s408, 0
      %s411 = sadd.s32 %s410, 1
      %s412 = scalar_select %p409, %s410, %s411
      %p415 = pneg %p409
      %p416 = scmp.eq.s32.totalorder %s30, 1
      %p417 = por %p415, %p416
      %p418 = scmp.ne.s32.totalorder %s410, %s413
      %p419 = scmp.eq.s32.totalorder %s30, 0
      %p420 = por %p418, %p419
      %p421 = scmp.ne.s32.totalorder %s410, %s413
      %p422 = scmp.eq.s32.totalorder %s35, 1
      %p423 = por %p421, %p422
      %p424 = scmp.ne.s32.totalorder %s413, %s414
      %p425 = scmp.eq.s32.totalorder %s35, 0
      %p426 = por %p424, %p425
      %p427 = scmp.ne.s32.totalorder %s413, %s414
      %p428 = scmp.eq.s32.totalorder %s36, 1
      %p429 = por %p427, %p428
      %p431 = scmp.ne.s32.totalorder %s414, %s430
      %p432 = scmp.eq.s32.totalorder %s36, 0
      %p433 = por %p431, %p432
      %s435 = sadd.s32 %s434, 1
      %p438 = scmp.eq.s32.totalorder %s30, 1
      %p439 = scmp.ne.s32.totalorder %s434, %s436
      %p440 = scmp.eq.s32.totalorder %s30, 0
      %p441 = por %p439, %p440
      %p442 = scmp.ne.s32.totalorder %s434, %s436
      %p443 = scmp.eq.s32.totalorder %s35, 1
      %p444 = por %p442, %p443
      %p445 = scmp.ne.s32.totalorder %s436, %s437
      %p446 = scmp.eq.s32.totalorder %s35, 0
      %p447 = por %p445, %p446
      %p448 = scmp.ne.s32.totalorder %s436, %s437
      %p449 = scmp.eq.s32.totalorder %s36, 1
      %p450 = por %p448, %p449
      %p452 = scmp.ne.s32.totalorder %s437, %s451
      %p453 = scmp.eq.s32.totalorder %s36, 0
      %p454 = por %p452, %p453
      %s456 = sadd.s32 %s455, 1
      %p459 = scmp.eq.s32.totalorder %s30, 1
      %p460 = scmp.ne.s32.totalorder %s455, %s457
      %p461 = scmp.eq.s32.totalorder %s30, 0
      %p462 = por %p460, %p461
      %p463 = scmp.ne.s32.totalorder %s455, %s457
      %p464 = scmp.eq.s32.totalorder %s35, 1
      %p465 = por %p463, %p464
      %p466 = scmp.ne.s32.totalorder %s457, %s458
      %p467 = scmp.eq.s32.totalorder %s35, 0
      %p468 = por %p466, %p467
      %p469 = scmp.ne.s32.totalorder %s457, %s458
      %p470 = scmp.eq.s32.totalorder %s36, 1
      %p471 = por %p469, %p470
      %p473 = scmp.ne.s32.totalorder %s458, %s472
      %p474 = scmp.eq.s32.totalorder %s36, 0
      %p475 = por %p473, %p474
      %s477 = sadd.s32 %s476, 1
      %p480 = scmp.eq.s32.totalorder %s30, 1
      %p481 = scmp.ne.s32.totalorder %s476, %s478
      %p482 = scmp.eq.s32.totalorder %s30, 0
      %p483 = por %p481, %p482
      %p484 = scmp.ne.s32.totalorder %s476, %s478
      %p485 = scmp.eq.s32.totalorder %s35, 1
      %p486 = por %p484, %p485
      %p487 = scmp.ne.s32.totalorder %s478, %s479
      %p488 = scmp.eq.s32.totalorder %s35, 0
      %p489 = por %p487, %p488
      %p490 = scmp.ne.s32.totalorder %s478, %s479
      %p491 = scmp.eq.s32.totalorder %s36, 1
      %p492 = por %p490, %p491
      %p494 = scmp.ne.s32.totalorder %s479, %s493
      %p495 = scmp.eq.s32.totalorder %s36, 0
      %p496 = por %p494, %p495
      %s498 = sadd.s32 %s497, 1
      %p501 = scmp.eq.s32.totalorder %s30, 1
      %p502 = scmp.ne.s32.totalorder %s497, %s499
      %p503 = scmp.eq.s32.totalorder %s30, 0
      %p504 = por %p502, %p503
      %p505 = scmp.ne.s32.totalorder %s497, %s499
      %p506 = scmp.eq.s32.totalorder %s35, 1
      %p507 = por %p505, %p506
      %p508 = scmp.ne.s32.totalorder %s499, %s500
      %p509 = scmp.eq.s32.totalorder %s35, 0
      %p510 = por %p508, %p509
      %p511 = scmp.ne.s32.totalorder %s499, %s500
      %p512 = scmp.eq.s32.totalorder %s36, 1
      %p513 = por %p511, %p512
      %p515 = scmp.ne.s32.totalorder %s500, %s514
      %p516 = scmp.eq.s32.totalorder %s36, 0
      %p517 = por %p515, %p516
      %s519 = sadd.s32 %s518, 1
      %p522 = scmp.eq.s32.totalorder %s30, 1
      %p523 = scmp.ne.s32.totalorder %s518, %s520
      %p524 = scmp.eq.s32.totalorder %s30, 0
      %p525 = por %p523, %p524
      %p526 = scmp.ne.s32.totalorder %s518, %s520
      %p527 = scmp.eq.s32.totalorder %s35, 1
      %p528 = por %p526, %p527
      %p529 = scmp.ne.s32.totalorder %s520, %s521
      %p530 = scmp.eq.s32.totalorder %s35, 0
      %p531 = por %p529, %p530
      %p532 = scmp.ne.s32.totalorder %s520, %s521
      %p533 = scmp.eq.s32.totalorder %s36, 1
      %p534 = por %p532, %p533
      %p536 = scmp.ne.s32.totalorder %s521, %s535
      %p537 = scmp.eq.s32.totalorder %s36, 0
      %p538 = por %p536, %p537
      %p539 = scmp.le.s32.totalorder 1, %s30
      %p540 = scmp.lt.s32.totalorder %s30, 3
      %p541 = pnand %p539, %p540
      %p542 = pneg %p541
      // Predicated region
      $region9: #{tpu_custom_call.1} parent=5 // pred_check
        _
      $region10: #{tpu_custom_call.1} parent=5 // pred_check_branch
        %544 = sbr.rel (%p541) target = $region12
      $region11: #{tpu_custom_call.1} parent=5 // pred_region
        %s545 = ssub.s32 %s30, 1
        // Predicated region
        $region13: #{tpu_custom_call.1} parent=11 // pred_check
          %p546 = pneg %p51
        $region14: #{tpu_custom_call.1} parent=11 // pred_check_branch
          %548 = sbr.rel (%p546) target = $region16
        $region15: #{tpu_custom_call.1} parent=11 // pred_region
          %s550 = ssub.s32 256, 256
          %551 = vsyncadd [#allocation4], %s550
          %s552 = sshll.u32 [#allocation3], 4
          %s553 = int_to_ptr.vmem [resolvable:$true] %s552
          %558 = dma.hbm_to_vmem [thread:$0]  %s0, 256, %s553, [#allocation4], 128, 128, 8
        $region16: #{tpu_custom_call.1} parent=11 // pred_fallthru
          _
        // Predicated region
        $region17: #{tpu_custom_call.1} parent=11 // pred_check
          %p559 = pneg %p72
        $region18: #{tpu_custom_call.1} parent=11 // pred_check_branch
          %561 = sbr.rel (%p559) target = $region20
        $region19: #{tpu_custom_call.1} parent=11 // pred_region
          %s563 = ssub.s32 256, 256
          %564 = vsyncadd [#allocation7], %s563
          %s565 = sshll.u32 [#allocation6], 4
          %s566 = int_to_ptr.vmem [resolvable:$true] %s565
          %571 = dma.hbm_to_vmem [thread:$0]  %s1, 256, %s566, [#allocation7], 128, 128, 8
        $region20: #{tpu_custom_call.1} parent=11 // pred_fallthru
          _
        // Predicated region
        $region21: #{tpu_custom_call.1} parent=11 // pred_check
          %p572 = pneg %p93
        $region22: #{tpu_custom_call.1} parent=11 // pred_check_branch
          %574 = sbr.rel (%p572) target = $region24
        $region23: #{tpu_custom_call.1} parent=11 // pred_region
          %s576 = ssub.s32 16, 16
          %577 = vsyncadd [#allocation7], %s576
          %s579 = sshll.u32 [#allocation8], 4
          %s580 = int_to_ptr.vmem [resolvable:$true] %s579
          %582 = dma.hbm_to_vmem [thread:$0]  %s2, 16, %s580, [#allocation7]
        $region24: #{tpu_custom_call.1} parent=11 // pred_fallthru
          _
        // Predicated region
        $region25: #{tpu_custom_call.1} parent=11 // pred_check
          %p583 = pneg %p114
        $region26: #{tpu_custom_call.1} parent=11 // pred_check_branch
          %585 = sbr.rel (%p583) target = $region28
        $region27: #{tpu_custom_call.1} parent=11 // pred_region
          %s587 = ssub.s32 16, 16
          %588 = vsyncadd [#allocation10], %s587
          %s590 = sshll.u32 [#allocation9], 4
          %s591 = int_to_ptr.vmem [resolvable:$true] %s590
          %593 = dma.hbm_to_vmem [thread:$0]  %s3, 16, %s591, [#allocation10]
        $region28: #{tpu_custom_call.1} parent=11 // pred_fallthru
          _
        // Predicated region
        $region29: #{tpu_custom_call.1} parent=11 // pred_check
          %p594 = pneg %p447
        $region30: #{tpu_custom_call.1} parent=11 // pred_check_branch
          %596 = sbr.rel (%p594) target = $region32
        $region31: #{tpu_custom_call.1} parent=11 // pred_region
          %s598 = ssub.s32 1024, 1024
          %599 = vsyncadd [#allocation7], %s598
          %s600 = sshll.u32 [#allocation22], 4
          %s601 = int_to_ptr.vmem [resolvable:$true] %s600
          %606 = dma.hbm_to_vmem [thread:$0]  %s16, 1024, %s601, [#allocation7], 64, 64, 4
        $region32: #{tpu_custom_call.1} parent=11 // pred_fallthru
          _
        // Predicated region
        $region33: #{tpu_custom_call.1} parent=11 // pred_check
          %p607 = pneg %p468
        $region34: #{tpu_custom_call.1} parent=11 // pred_check_branch
          %609 = sbr.rel (%p607) target = $region36
        $region35: #{tpu_custom_call.1} parent=11 // pred_region
          %s611 = ssub.s32 16, 16
          %612 = vsyncadd [#allocation10], %s611
          %s614 = sshll.u32 [#allocation23], 4
          %s615 = int_to_ptr.vmem [resolvable:$true] %s614
          %617 = dma.hbm_to_vmem [thread:$0]  %s17, 16, %s615, [#allocation10]
        $region36: #{tpu_custom_call.1} parent=11 // pred_fallthru
          _
        // Predicated region
        $region37: #{tpu_custom_call.1} parent=11 // pred_check
          %p618 = pneg %p489
        $region38: #{tpu_custom_call.1} parent=11 // pred_check_branch
          %620 = sbr.rel (%p618) target = $region40
        $region39: #{tpu_custom_call.1} parent=11 // pred_region
          _
        $region40: #{tpu_custom_call.1} parent=11 // pred_fallthru
          _
        // Predicated region
        $region41: #{tpu_custom_call.1} parent=11 // pred_check
          %p621 = pneg %p510
        $region42: #{tpu_custom_call.1} parent=11 // pred_check_branch
          %623 = sbr.rel (%p621) target = $region44
        $region43: #{tpu_custom_call.1} parent=11 // pred_region
          _
        $region44: #{tpu_custom_call.1} parent=11 // pred_fallthru
          _
      $region12: #{tpu_custom_call.1} parent=5 // pred_fallthru
        _
      %p624 = scmp.lt.s32.totalorder %s30, 2
      // Predicated region
      $region45: #{tpu_custom_call.1} parent=5 // pred_check
        %p625 = pneg %p624
      $region46: #{tpu_custom_call.1} parent=5 // pred_check_branch
        %627 = sbr.rel (%p625) target = $region48
      $region47: #{tpu_custom_call.1} parent=5 // pred_region
        // Predicated region
        $region49: #{tpu_custom_call.1} parent=47 // pred_check
          %p628 = pneg %p134
        $region50: #{tpu_custom_call.1} parent=47 // pred_check_branch
          %630 = sbr.rel (%p628) target = $region52
        $region51: #{tpu_custom_call.1} parent=47 // pred_region
          %s631 = sand.u32 %s30, 1
          %s632 = scalar_lea.sflag [#allocation4], %s631
          %s633 = sand.u32 %s124, 1
          %s634 = smul.addr %s633, 192
          %s635 = scalar_lea.vmem [#allocation11], %s634
          %s637 = ssub.s32 3072, 3072
          %638 = vsyncadd %s632, %s637
          %s639 = smul.addr %s30, 48
          %s640 = smul.addr %s639, 64
          %s641 = scalar_lea.hbm %s4, %s640
          %s642 = sshll.u32 %s635, 4
          %s643 = int_to_ptr.vmem [resolvable:$true] %s642
          %648 = dma.hbm_to_vmem [thread:$0]  %s641, 3072, %s643, %s632, 192, 192, 12
        $region52: #{tpu_custom_call.1} parent=47 // pred_fallthru
          _
        // Predicated region
        $region53: #{tpu_custom_call.1} parent=47 // pred_check
          %p649 = pneg %p160
        $region54: #{tpu_custom_call.1} parent=47 // pred_check_branch
          %651 = sbr.rel (%p649) target = $region56
        $region55: #{tpu_custom_call.1} parent=47 // pred_region
          %s652 = sand.u32 %s30, 1
          %s653 = scalar_lea.sflag [#allocation4], %s652
          %s654 = sand.u32 %s150, 1
          %s655 = smul.addr %s654, 3
          %s656 = scalar_lea.vmem [#allocation12], %s655
          %s658 = ssub.s32 48, 48
          %659 = vsyncadd %s653, %s658
          %s660 = smul.addr %s30, 3
          %s661 = smul.addr %s660, 16
          %s662 = scalar_lea.hbm %s5, %s661
          %s664 = sshll.u32 %s656, 4
          %s665 = int_to_ptr.vmem [resolvable:$true] %s664
          %667 = dma.hbm_to_vmem [thread:$0]  %s662, 48, %s665, %s653
        $region56: #{tpu_custom_call.1} parent=47 // pred_fallthru
          _
        // Predicated region
        $region57: #{tpu_custom_call.1} parent=47 // pred_check
          %p668 = pneg %p186
        $region58: #{tpu_custom_call.1} parent=47 // pred_check_branch
          %670 = sbr.rel (%p668) target = $region60
        $region59: #{tpu_custom_call.1} parent=47 // pred_region
          %s671 = sand.u32 %s30, 1
          %s672 = scalar_lea.sflag [#allocation4], %s671
          %s673 = sand.u32 %s176, 1
          %s674 = smul.addr %s673, 64
          %s675 = scalar_lea.vmem [#allocation13], %s674
          %s677 = ssub.s32 1024, 1024
          %678 = vsyncadd %s672, %s677
          %s679 = smul.addr %s30, 16
          %s680 = smul.addr %s679, 64
          %s681 = scalar_lea.hbm %s6, %s680
          %s682 = sshll.u32 %s675, 4
          %s683 = int_to_ptr.vmem [resolvable:$true] %s682
          %688 = dma.hbm_to_vmem [thread:$0]  %s681, 1024, %s683, %s672, 64, 64, 4
        $region60: #{tpu_custom_call.1} parent=47 // pred_fallthru
          _
        // Predicated region
        $region61: #{tpu_custom_call.1} parent=47 // pred_check
          %p689 = pneg %p212
        $region62: #{tpu_custom_call.1} parent=47 // pred_check_branch
          %691 = sbr.rel (%p689) target = $region64
        $region63: #{tpu_custom_call.1} parent=47 // pred_region
          %s692 = sand.u32 %s30, 1
          %s693 = scalar_lea.sflag [#allocation4], %s692
          %s694 = sand.u32 %s202, 1
          %s695 = scalar_lea.vmem [#allocation14], %s694
          %s697 = ssub.s32 16, 16
          %698 = vsyncadd %s693, %s697
          %s699 = smul.addr %s30, 16
          %s700 = scalar_lea.hbm %s7, %s699
          %s702 = sshll.u32 %s695, 4
          %s703 = int_to_ptr.vmem [resolvable:$true] %s702
          %705 = dma.hbm_to_vmem [thread:$0]  %s700, 16, %s703, %s693
        $region64: #{tpu_custom_call.1} parent=47 // pred_fallthru
          _
        // Predicated region
        $region65: #{tpu_custom_call.1} parent=47 // pred_check
          %p706 = pneg %p238
        $region66: #{tpu_custom_call.1} parent=47 // pred_check_branch
          %708 = sbr.rel (%p706) target = $region68
        $region67: #{tpu_custom_call.1} parent=47 // pred_region
          %s709 = sand.u32 %s30, 1
          %s710 = scalar_lea.sflag [#allocation4], %s709
          %s711 = sand.u32 %s228, 1
          %s712 = scalar_lea.vmem [#allocation15], %s711
          %s714 = ssub.s32 16, 16
          %715 = vsyncadd %s710, %s714
          %s716 = smul.addr %s30, 16
          %s717 = scalar_lea.hbm %s8, %s716
          %s719 = sshll.u32 %s712, 4
          %s720 = int_to_ptr.vmem [resolvable:$true] %s719
          %722 = dma.hbm_to_vmem [thread:$0]  %s717, 16, %s720, %s710
        $region68: #{tpu_custom_call.1} parent=47 // pred_fallthru
          _
        // Predicated region
        $region69: #{tpu_custom_call.1} parent=47 // pred_check
          %p723 = pneg %p264
        $region70: #{tpu_custom_call.1} parent=47 // pred_check_branch
          %725 = sbr.rel (%p723) target = $region72
        $region71: #{tpu_custom_call.1} parent=47 // pred_region
          %s726 = sand.u32 %s30, 1
          %s727 = scalar_lea.sflag [#allocation4], %s726
          %s728 = sand.u32 %s254, 1
          %s729 = scalar_lea.vmem [#allocation16], %s728
          %s731 = ssub.s32 16, 16
          %732 = vsyncadd %s727, %s731
          %s733 = smul.addr %s30, 16
          %s734 = scalar_lea.hbm %s9, %s733
          %s736 = sshll.u32 %s729, 4
          %s737 = int_to_ptr.vmem [resolvable:$true] %s736
          %739 = dma.hbm_to_vmem [thread:$0]  %s734, 16, %s737, %s727
        $region72: #{tpu_custom_call.1} parent=47 // pred_fallthru
          _
        // Predicated region
        $region73: #{tpu_custom_call.1} parent=47 // pred_check
          %p740 = pneg %p290
        $region74: #{tpu_custom_call.1} parent=47 // pred_check_branch
          %742 = sbr.rel (%p740) target = $region76
        $region75: #{tpu_custom_call.1} parent=47 // pred_region
          %s743 = sand.u32 %s30, 1
          %s744 = scalar_lea.sflag [#allocation4], %s743
          %s745 = sand.u32 %s280, 1
          %s746 = smul.addr %s745, 128
          %s747 = scalar_lea.vmem [#allocation17], %s746
          %s749 = ssub.s32 2048, 2048
          %750 = vsyncadd %s744, %s749
          %s751 = smul.addr %s30, 32
          %s752 = smul.addr %s751, 64
          %s753 = scalar_lea.hbm %s10, %s752
          %s754 = sshll.u32 %s747, 4
          %s755 = int_to_ptr.vmem [resolvable:$true] %s754
          %760 = dma.hbm_to_vmem [thread:$0]  %s753, 2048, %s755, %s744, 128, 128, 8
        $region76: #{tpu_custom_call.1} parent=47 // pred_fallthru
          _
        // Predicated region
        $region77: #{tpu_custom_call.1} parent=47 // pred_check
          %p761 = pneg %p316
        $region78: #{tpu_custom_call.1} parent=47 // pred_check_branch
          %763 = sbr.rel (%p761) target = $region80
        $region79: #{tpu_custom_call.1} parent=47 // pred_region
          %p764 = scmp.lt.s32.totalorder %s30, 1
          %s765 = scalar_select %p764, %s30, 1
          %s766 = smul.addr %s765, 2
          %s767 = scalar_lea.vmem %s11, %s766
        $region80: #{tpu_custom_call.1} parent=47 // pred_fallthru
          _
        // Predicated region
        $region81: #{tpu_custom_call.1} parent=47 // pred_check
          %p768 = pneg %p342
        $region82: #{tpu_custom_call.1} parent=47 // pred_check_branch
          %770 = sbr.rel (%p768) target = $region84
        $region83: #{tpu_custom_call.1} parent=47 // pred_region
          %s771 = sand.u32 %s30, 1
          %s772 = scalar_lea.sflag [#allocation4], %s771
          %s773 = sand.u32 %s332, 1
          %s774 = smul.addr %s773, 128
          %s775 = scalar_lea.vmem [#allocation18], %s774
          %s777 = ssub.s32 2048, 2048
          %778 = vsyncadd %s772, %s777
          %s779 = smul.addr %s30, 32
          %s780 = smul.addr %s779, 64
          %s781 = scalar_lea.hbm %s12, %s780
          %s782 = sshll.u32 %s775, 4
          %s783 = int_to_ptr.vmem [resolvable:$true] %s782
          %788 = dma.hbm_to_vmem [thread:$0]  %s781, 2048, %s783, %s772, 64, 64, 4
        $region84: #{tpu_custom_call.1} parent=47 // pred_fallthru
          _
        // Predicated region
        $region85: #{tpu_custom_call.1} parent=47 // pred_check
          %p789 = pneg %p368
        $region86: #{tpu_custom_call.1} parent=47 // pred_check_branch
          %791 = sbr.rel (%p789) target = $region88
        $region87: #{tpu_custom_call.1} parent=47 // pred_region
          %s792 = sand.u32 %s30, 1
          %s793 = scalar_lea.sflag [#allocation4], %s792
          %s794 = sand.u32 %s358, 1
          %s795 = scalar_lea.vmem [#allocation19], %s794
          %s797 = ssub.s32 16, 16
          %798 = vsyncadd %s793, %s797
          %s799 = smul.addr %s30, 16
          %s800 = scalar_lea.hbm %s13, %s799
          %s802 = sshll.u32 %s795, 4
          %s803 = int_to_ptr.vmem [resolvable:$true] %s802
          %805 = dma.hbm_to_vmem [thread:$0]  %s800, 16, %s803, %s793
        $region88: #{tpu_custom_call.1} parent=47 // pred_fallthru
          _
        // Predicated region
        $region89: #{tpu_custom_call.1} parent=47 // pred_check
          %p806 = pneg %p394
        $region90: #{tpu_custom_call.1} parent=47 // pred_check_branch
          %808 = sbr.rel (%p806) target = $region92
        $region91: #{tpu_custom_call.1} parent=47 // pred_region
          %s809 = sand.u32 %s30, 1
          %s810 = scalar_lea.sflag [#allocation4], %s809
          %s811 = sand.u32 %s384, 1
          %s812 = scalar_lea.vmem [#allocation20], %s811
          %s814 = ssub.s32 16, 16
          %815 = vsyncadd %s810, %s814
          %s816 = smul.addr %s30, 16
          %s817 = scalar_lea.hbm %s14, %s816
          %s819 = sshll.u32 %s812, 4
          %s820 = int_to_ptr.vmem [resolvable:$true] %s819
          %822 = dma.hbm_to_vmem [thread:$0]  %s817, 16, %s820, %s810
        $region92: #{tpu_custom_call.1} parent=47 // pred_fallthru
          _
        // Predicated region
        $region93: #{tpu_custom_call.1} parent=47 // pred_check
          %p823 = pneg %p420
        $region94: #{tpu_custom_call.1} parent=47 // pred_check_branch
          %825 = sbr.rel (%p823) target = $region96
        $region95: #{tpu_custom_call.1} parent=47 // pred_region
          %s826 = sand.u32 %s30, 1
          %s827 = scalar_lea.sflag [#allocation4], %s826
          %s828 = sand.u32 %s410, 1
          %s829 = scalar_lea.vmem [#allocation21], %s828
          %s831 = ssub.s32 16, 16
          %832 = vsyncadd %s827, %s831
          %s833 = smul.addr %s30, 16
          %s834 = scalar_lea.hbm %s15, %s833
          %s836 = sshll.u32 %s829, 4
          %s837 = int_to_ptr.vmem [resolvable:$true] %s836
          %839 = dma.hbm_to_vmem [thread:$0]  %s834, 16, %s837, %s827
        $region96: #{tpu_custom_call.1} parent=47 // pred_fallthru
          _
      $region48: #{tpu_custom_call.1} parent=5 // pred_fallthru
        _
      %p840 = scmp.le.s32.totalorder 1, %s30
      %p841 = scmp.lt.s32.totalorder %s30, 3
      %p842 = pnand %p840, %p841
      %p843 = pneg %p842
      // Predicated region
      $region97: #{tpu_custom_call.1} parent=5 // pred_check
        _
      $region98: #{tpu_custom_call.1} parent=5 // pred_check_branch
        %845 = sbr.rel (%p842) target = $region100
      $region99: #{tpu_custom_call.1} parent=5 // pred_region
        %s846 = ssub.s32 %s30, 1
        // Predicated region
        $region101: #{tpu_custom_call.1} parent=99 // pred_check
          %p847 = pneg %p51
        $region102: #{tpu_custom_call.1} parent=99 // pred_check_branch
          %849 = sbr.rel (%p847) target = $region104
        $region103: #{tpu_custom_call.1} parent=99 // pred_region
          %850 = dma.done [#allocation4], 256
        $region104: #{tpu_custom_call.1} parent=99 // pred_fallthru
          _
        // Predicated region
        $region105: #{tpu_custom_call.1} parent=99 // pred_check
          %p851 = pneg %p72
        $region106: #{tpu_custom_call.1} parent=99 // pred_check_branch
          %853 = sbr.rel (%p851) target = $region108
        $region107: #{tpu_custom_call.1} parent=99 // pred_region
          %854 = dma.done [#allocation7], 256
        $region108: #{tpu_custom_call.1} parent=99 // pred_fallthru
          _
        // Predicated region
        $region109: #{tpu_custom_call.1} parent=99 // pred_check
          %p855 = pneg %p93
        $region110: #{tpu_custom_call.1} parent=99 // pred_check_branch
          %857 = sbr.rel (%p855) target = $region112
        $region111: #{tpu_custom_call.1} parent=99 // pred_region
          %858 = dma.done [#allocation7], 16
        $region112: #{tpu_custom_call.1} parent=99 // pred_fallthru
          _
        // Predicated region
        $region113: #{tpu_custom_call.1} parent=99 // pred_check
          %p859 = pneg %p114
        $region114: #{tpu_custom_call.1} parent=99 // pred_check_branch
          %861 = sbr.rel (%p859) target = $region116
        $region115: #{tpu_custom_call.1} parent=99 // pred_region
          %862 = dma.done [#allocation10], 16
        $region116: #{tpu_custom_call.1} parent=99 // pred_fallthru
          _
        %s863 = sand.u32 %s35, 1
        %s864 = scalar_lea.sflag [#allocation4], %s863
        %s865 = sand.u32 %s127, 1
        %s866 = smul.addr %s865, 192
        %s867 = scalar_lea.vmem [#allocation11], %s866
        // Predicated region
        $region117: #{tpu_custom_call.1} parent=99 // pred_check
          %p868 = pneg %p140
        $region118: #{tpu_custom_call.1} parent=99 // pred_check_branch
          %870 = sbr.rel (%p868) target = $region120
        $region119: #{tpu_custom_call.1} parent=99 // pred_region
          %871 = dma.done %s864, 3072
        $region120: #{tpu_custom_call.1} parent=99 // pred_fallthru
          _
        %s872 = sand.u32 %s35, 1
        %s873 = scalar_lea.sflag [#allocation4], %s872
        %s874 = sand.u32 %s153, 1
        %s875 = smul.addr %s874, 3
        %s876 = scalar_lea.vmem [#allocation12], %s875
        // Predicated region
        $region121: #{tpu_custom_call.1} parent=99 // pred_check
          %p877 = pneg %p166
        $region122: #{tpu_custom_call.1} parent=99 // pred_check_branch
          %879 = sbr.rel (%p877) target = $region124
        $region123: #{tpu_custom_call.1} parent=99 // pred_region
          %880 = dma.done %s873, 48
        $region124: #{tpu_custom_call.1} parent=99 // pred_fallthru
          _
        %s881 = sand.u32 %s35, 1
        %s882 = scalar_lea.sflag [#allocation4], %s881
        %s883 = sand.u32 %s179, 1
        %s884 = smul.addr %s883, 64
        %s885 = scalar_lea.vmem [#allocation13], %s884
        // Predicated region
        $region125: #{tpu_custom_call.1} parent=99 // pred_check
          %p886 = pneg %p192
        $region126: #{tpu_custom_call.1} parent=99 // pred_check_branch
          %888 = sbr.rel (%p886) target = $region128
        $region127: #{tpu_custom_call.1} parent=99 // pred_region
          %889 = dma.done %s882, 1024
        $region128: #{tpu_custom_call.1} parent=99 // pred_fallthru
          _
        %s890 = sand.u32 %s35, 1
        %s891 = scalar_lea.sflag [#allocation4], %s890
        %s892 = sand.u32 %s205, 1
        %s893 = scalar_lea.vmem [#allocation14], %s892
        // Predicated region
        $region129: #{tpu_custom_call.1} parent=99 // pred_check
          %p894 = pneg %p218
        $region130: #{tpu_custom_call.1} parent=99 // pred_check_branch
          %896 = sbr.rel (%p894) target = $region132
        $region131: #{tpu_custom_call.1} parent=99 // pred_region
          %897 = dma.done %s891, 16
        $region132: #{tpu_custom_call.1} parent=99 // pred_fallthru
          _
        %s898 = sand.u32 %s35, 1
        %s899 = scalar_lea.sflag [#allocation4], %s898
        %s900 = sand.u32 %s231, 1
        %s901 = scalar_lea.vmem [#allocation15], %s900
        // Predicated region
        $region133: #{tpu_custom_call.1} parent=99 // pred_check
          %p902 = pneg %p244
        $region134: #{tpu_custom_call.1} parent=99 // pred_check_branch
          %904 = sbr.rel (%p902) target = $region136
        $region135: #{tpu_custom_call.1} parent=99 // pred_region
          %905 = dma.done %s899, 16
        $region136: #{tpu_custom_call.1} parent=99 // pred_fallthru
          _
        %s906 = sand.u32 %s35, 1
        %s907 = scalar_lea.sflag [#allocation4], %s906
        %s908 = sand.u32 %s257, 1
        %s909 = scalar_lea.vmem [#allocation16], %s908
        // Predicated region
        $region137: #{tpu_custom_call.1} parent=99 // pred_check
          %p910 = pneg %p270
        $region138: #{tpu_custom_call.1} parent=99 // pred_check_branch
          %912 = sbr.rel (%p910) target = $region140
        $region139: #{tpu_custom_call.1} parent=99 // pred_region
          %913 = dma.done %s907, 16
        $region140: #{tpu_custom_call.1} parent=99 // pred_fallthru
          _
        %s914 = sand.u32 %s35, 1
        %s915 = scalar_lea.sflag [#allocation4], %s914
        %s916 = sand.u32 %s283, 1
        %s917 = smul.addr %s916, 128
        %s918 = scalar_lea.vmem [#allocation17], %s917
        // Predicated region
        $region141: #{tpu_custom_call.1} parent=99 // pred_check
          %p919 = pneg %p296
        $region142: #{tpu_custom_call.1} parent=99 // pred_check_branch
          %921 = sbr.rel (%p919) target = $region144
        $region143: #{tpu_custom_call.1} parent=99 // pred_region
          %922 = dma.done %s915, 2048
        $region144: #{tpu_custom_call.1} parent=99 // pred_fallthru
          _
        %s923 = sand.u32 %s35, 1
        %s924 = scalar_lea.sflag [#allocation4], %s923
        %s925 = sand.u32 %s335, 1
        %s926 = smul.addr %s925, 128
        %s927 = scalar_lea.vmem [#allocation18], %s926
        // Predicated region
        $region145: #{tpu_custom_call.1} parent=99 // pred_check
          %p928 = pneg %p348
        $region146: #{tpu_custom_call.1} parent=99 // pred_check_branch
          %930 = sbr.rel (%p928) target = $region148
        $region147: #{tpu_custom_call.1} parent=99 // pred_region
          %931 = dma.done %s924, 2048
        $region148: #{tpu_custom_call.1} parent=99 // pred_fallthru
          _
        %s932 = sand.u32 %s35, 1
        %s933 = scalar_lea.sflag [#allocation4], %s932
        %s934 = sand.u32 %s361, 1
        %s935 = scalar_lea.vmem [#allocation19], %s934
        // Predicated region
        $region149: #{tpu_custom_call.1} parent=99 // pred_check
          %p936 = pneg %p374
        $region150: #{tpu_custom_call.1} parent=99 // pred_check_branch
          %938 = sbr.rel (%p936) target = $region152
        $region151: #{tpu_custom_call.1} parent=99 // pred_region
          %939 = dma.done %s933, 16
        $region152: #{tpu_custom_call.1} parent=99 // pred_fallthru
          _
        %s940 = sand.u32 %s35, 1
        %s941 = scalar_lea.sflag [#allocation4], %s940
        %s942 = sand.u32 %s387, 1
        %s943 = scalar_lea.vmem [#allocation20], %s942
        // Predicated region
        $region153: #{tpu_custom_call.1} parent=99 // pred_check
          %p944 = pneg %p400
        $region154: #{tpu_custom_call.1} parent=99 // pred_check_branch
          %946 = sbr.rel (%p944) target = $region156
        $region155: #{tpu_custom_call.1} parent=99 // pred_region
          %947 = dma.done %s941, 16
        $region156: #{tpu_custom_call.1} parent=99 // pred_fallthru
          _
        %s948 = sand.u32 %s35, 1
        %s949 = scalar_lea.sflag [#allocation4], %s948
        %s950 = sand.u32 %s413, 1
        %s951 = scalar_lea.vmem [#allocation21], %s950
        // Predicated region
        $region157: #{tpu_custom_call.1} parent=99 // pred_check
          %p952 = pneg %p426
        $region158: #{tpu_custom_call.1} parent=99 // pred_check_branch
          %954 = sbr.rel (%p952) target = $region160
        $region159: #{tpu_custom_call.1} parent=99 // pred_region
          %955 = dma.done %s949, 16
        $region160: #{tpu_custom_call.1} parent=99 // pred_fallthru
          _
        // Predicated region
        $region161: #{tpu_custom_call.1} parent=99 // pred_check
          %p956 = pneg %p447
        $region162: #{tpu_custom_call.1} parent=99 // pred_check_branch
          %958 = sbr.rel (%p956) target = $region164
        $region163: #{tpu_custom_call.1} parent=99 // pred_region
          %959 = dma.done [#allocation7], 1024
        $region164: #{tpu_custom_call.1} parent=99 // pred_fallthru
          _
        // Predicated region
        $region165: #{tpu_custom_call.1} parent=99 // pred_check
          %p960 = pneg %p468
        $region166: #{tpu_custom_call.1} parent=99 // pred_check_branch
          %962 = sbr.rel (%p960) target = $region168
        $region167: #{tpu_custom_call.1} parent=99 // pred_region
          %963 = dma.done [#allocation10], 16
        $region168: #{tpu_custom_call.1} parent=99 // pred_fallthru
          _
        %p964 = pneg %p51
        %p965 = pneg %p48
        %p966 = pneg %p72
        %p967 = pneg %p69
        %p968 = pneg %p93
        %p969 = pneg %p90
        %p970 = pneg %p114
        %p971 = pneg %p111
        %s972 = sand.u32 %s35, 1
        %s973 = scalar_lea.sflag [#allocation4], %s972
        %s974 = sand.u32 %s127, 1
        %s975 = smul.addr %s974, 192
        %s976 = scalar_lea.vmem [#allocation11], %s975
        %p977 = pneg %p140
        %p978 = pneg %p137
        %s979 = sand.u32 %s35, 1
        %s980 = scalar_lea.sflag [#allocation4], %s979
        %s981 = sand.u32 %s153, 1
        %s982 = smul.addr %s981, 3
        %s983 = scalar_lea.vmem [#allocation12], %s982
        %p984 = pneg %p166
        %p985 = pneg %p163
        %s986 = sand.u32 %s35, 1
        %s987 = scalar_lea.sflag [#allocation4], %s986
        %s988 = sand.u32 %s179, 1
        %s989 = smul.addr %s988, 64
        %s990 = scalar_lea.vmem [#allocation13], %s989
        %p991 = pneg %p192
        %p992 = pneg %p189
        %s993 = sand.u32 %s35, 1
        %s994 = scalar_lea.sflag [#allocation4], %s993
        %s995 = sand.u32 %s205, 1
        %s996 = scalar_lea.vmem [#allocation14], %s995
        %p997 = pneg %p218
        %p998 = pneg %p215
        %s999 = sand.u32 %s35, 1
        %s1000 = scalar_lea.sflag [#allocation4], %s999
        %s1001 = sand.u32 %s231, 1
        %s1002 = scalar_lea.vmem [#allocation15], %s1001
        %p1003 = pneg %p244
        %p1004 = pneg %p241
        %s1005 = sand.u32 %s35, 1
        %s1006 = scalar_lea.sflag [#allocation4], %s1005
        %s1007 = sand.u32 %s257, 1
        %s1008 = scalar_lea.vmem [#allocation16], %s1007
        %p1009 = pneg %p270
        %p1010 = pneg %p267
        %s1011 = sand.u32 %s35, 1
        %s1012 = scalar_lea.sflag [#allocation4], %s1011
        %s1013 = sand.u32 %s283, 1
        %s1014 = smul.addr %s1013, 128
        %s1015 = scalar_lea.vmem [#allocation17], %s1014
        %p1016 = pneg %p296
        %p1017 = pneg %p293
        %p1018 = scmp.lt.s32.totalorder %s35, 1
        %s1019 = scalar_select %p1018, %s35, 1
        %s1020 = smul.addr %s1019, 2
        %s1021 = scalar_lea.vmem %s11, %s1020
        %p1022 = pneg %p322
        %p1023 = pneg %p319
        %s1024 = sand.u32 %s35, 1
        %s1025 = scalar_lea.sflag [#allocation4], %s1024
        %s1026 = sand.u32 %s335, 1
        %s1027 = smul.addr %s1026, 128
        %s1028 = scalar_lea.vmem [#allocation18], %s1027
        %p1029 = pneg %p348
        %p1030 = pneg %p345
        %s1031 = sand.u32 %s35, 1
        %s1032 = scalar_lea.sflag [#allocation4], %s1031
        %s1033 = sand.u32 %s361, 1
        %s1034 = scalar_lea.vmem [#allocation19], %s1033
        %p1035 = pneg %p374
        %p1036 = pneg %p371
        %s1037 = sand.u32 %s35, 1
        %s1038 = scalar_lea.sflag [#allocation4], %s1037
        %s1039 = sand.u32 %s387, 1
        %s1040 = scalar_lea.vmem [#allocation20], %s1039
        %p1041 = pneg %p400
        %p1042 = pneg %p397
        %s1043 = sand.u32 %s35, 1
        %s1044 = scalar_lea.sflag [#allocation4], %s1043
        %s1045 = sand.u32 %s413, 1
        %s1046 = scalar_lea.vmem [#allocation21], %s1045
        %p1047 = pneg %p426
        %p1048 = pneg %p423
        %p1049 = pneg %p447
        %p1050 = pneg %p444
        %p1051 = pneg %p468
        %p1052 = pneg %p465
        %p1053 = pneg %p489
        %p1054 = pneg %p486
        %p1055 = pneg %p510
        %p1056 = pneg %p507
        %p1057 = pneg %p531
        %p1058 = pneg %p528
        %p1059 = scmp.lt.s32.totalorder %s35, 1
        %s1060 = scalar_select %p1059, %s35, 1
        %s1061 = smul.addr %s1060, 2
        %s1062 = scalar_lea.vmem %s11, %s1061
        %p1064 = scmp.eq.s32.totalorder %s35, 0
        // Predicated region
        $region169: #{tpu_custom_call.1} parent=99 // pred_check
          %p1065 = pneg %p1064
        $region170: #{tpu_custom_call.1} parent=99 // pred_check_branch
          %1067 = sbr.rel (%p1065) target = $region172
        $region171: #{tpu_custom_call.1} parent=99 // pred_region
          %v1068 = vld [vmem:[#allocation3] sm:$0xff]
          %v1069 = vld [vmem:[#allocation3 + $0x8] sm:$0xff]
          %v1070 = vld [vmem:[#allocation8] sm:$0x1]
          %v1071 = vld [vmem:[#allocation9] sm:$0x1]
          %1072 = vadd.xlane.f32.xlu0 %v1068
          %v1073 = vpop.xlane.xlu0 %1072
          %1074 = vadd.xlane.f32.xlu0 %v1069
          %v1075 = vpop.xlane.xlu0 %1074
          %v1076 = vrcp.pop 128.0
          %v1077 = vmul.f32 %v1073, %v1076
          %v1078 = vmul.f32 %v1075, %v1076
          %v1079 = vsub.f32 %v1068, %v1077
          %v1080 = vsub.f32 %v1069, %v1078
          %v1081 = vmul.f32 %v1079, %v1079
          %v1082 = vmul.f32 %v1080, %v1080
          %1083 = vadd.xlane.f32.xlu0 %v1081
          %v1084 = vpop.xlane.xlu0 %1083
          %1085 = vadd.xlane.f32.xlu0 %v1082
          %v1086 = vpop.xlane.xlu0 %1085
          %v1087 = vmul.f32 %v1084, %v1076
          %v1088 = vmul.f32 %v1086, %v1076
          %v1089 = vadd.f32 %v1087, 1e-12
          %v1090 = vadd.f32 %v1088, 1e-12
          %v1091 = vrsqrt.pop %v1089
          %v1092 = vrsqrt.pop %v1090
          %v1093 = vmul.f32 %v1079, %v1091
          %v1094 = vmul.f32 %v1080, %v1092
          %v1096 = vlaneseq
          %v1097 = vshrl.u32 %v1096, 7
          %v1098 = vsub.s32 0, %v1097
          %v1099 = vrot.slane %v1070, %v1098
          %v1101 = vmul.f32 %v1093, %v1099
          %v1102 = vmul.f32 %v1094, %v1099
          %v1104 = vlaneseq
          %v1105 = vshrl.u32 %v1104, 7
          %v1106 = vsub.s32 0, %v1105
          %v1107 = vrot.slane %v1071, %v1106
          %v1109 = vadd.f32 %v1101, %v1107
          %v1110 = vadd.f32 %v1102, %v1107
          %1111 = vst [vmem:[#allocation2] sm:$0xff] %v1109
          %1112 = vst [vmem:[#allocation2 + $0x8] sm:$0xff] %v1110
        $region172: #{tpu_custom_call.1} parent=99 // pred_fallthru
          _
        %v1113 = vld [vmem:[#allocation2] sm:$0xff]
        %v1114 = vld [vmem:[#allocation2 + $0x8] sm:$0xff]
        %v1115 = vld [vmem:[#allocation6] sm:$0xff]
        %v1116 = vld [vmem:[#allocation6 + $0x8] sm:$0xff]
        %v1117 = vld [vmem:[%s867] sm:$0xff]
        %v1118 = vld [vmem:[%s867 + $0x8] sm:$0xf]
        %v1119 = vld [vmem:[%s867 + $0xc] sm:$0xff]
        %v1120 = vld [vmem:[%s867 + $0x14] sm:$0xf]
        %v1121 = vld [vmem:[%s867 + $0x18] sm:$0xff]
        %v1122 = vld [vmem:[%s867 + $0x20] sm:$0xf]
        %v1123 = vld [vmem:[%s867 + $0x24] sm:$0xff]
        %v1124 = vld [vmem:[%s867 + $0x2c] sm:$0xf]
        %v1125 = vld [vmem:[%s867 + $0x30] sm:$0xff]
        %v1126 = vld [vmem:[%s867 + $0x38] sm:$0xf]
        %v1127 = vld [vmem:[%s867 + $0x3c] sm:$0xff]
        %v1128 = vld [vmem:[%s867 + $0x44] sm:$0xf]
        %v1129 = vld [vmem:[%s867 + $0x48] sm:$0xff]
        %v1130 = vld [vmem:[%s867 + $0x50] sm:$0xf]
        %v1131 = vld [vmem:[%s867 + $0x54] sm:$0xff]
        %v1132 = vld [vmem:[%s867 + $0x5c] sm:$0xf]
        %v1133 = vld [vmem:[%s867 + $0x60] sm:$0xff]
        %v1134 = vld [vmem:[%s867 + $0x68] sm:$0xf]
        %v1135 = vld [vmem:[%s867 + $0x6c] sm:$0xff]
        %v1136 = vld [vmem:[%s867 + $0x74] sm:$0xf]
        %v1137 = vld [vmem:[%s867 + $0x78] sm:$0xff]
        %v1138 = vld [vmem:[%s867 + $0x80] sm:$0xf]
        %v1139 = vld [vmem:[%s867 + $0x84] sm:$0xff]
        %v1140 = vld [vmem:[%s867 + $0x8c] sm:$0xf]
        %v1141 = vld [vmem:[%s867 + $0x90] sm:$0xff]
        %v1142 = vld [vmem:[%s867 + $0x98] sm:$0xf]
        %v1143 = vld [vmem:[%s867 + $0x9c] sm:$0xff]
        %v1144 = vld [vmem:[%s867 + $0xa4] sm:$0xf]
        %v1145 = vld [vmem:[%s867 + $0xa8] sm:$0xff]
        %v1146 = vld [vmem:[%s867 + $0xb0] sm:$0xf]
        %v1147 = vld [vmem:[%s867 + $0xb4] sm:$0xff]
        %v1148 = vld [vmem:[%s867 + $0xbc] sm:$0xf]
        %v1149 = vld [vmem:[%s876] sm:$0x7]
        %v1150 = vpack.c.bf16 %v1114, %v1113
        %v1152 = vlaneseq
        %v1153 = vshrl.u32 %v1152, 7
        %v1154 = vsub.s32 0, %v1153
        %v1155 = vrot.slane %v1149, %v1154
        %v1156 = vlaneseq
        %v1157 = vshrl.u32 %v1156, 7
        %v1158 = vsub.s32 1, %v1157
        %v1159 = vrot.slane %v1149, %v1158
        %v1160 = vlaneseq
        %v1161 = vshrl.u32 %v1160, 7
        %v1162 = vsub.s32 2, %v1161
        %v1163 = vrot.slane %v1149, %v1162
        %v1199 = vunpack.c.l.b16 %v1117
        %v1200 = vunpack.c.h.b16 %v1117
        %v1201 = vunpack.c.l.b16 %v1118
        %v1202 = vunpack.c.l.b16 %v1119
        %v1203 = vunpack.c.h.b16 %v1119
        %v1204 = vunpack.c.l.b16 %v1120
        %v1205 = vunpack.c.l.b16 %v1121
        %v1206 = vunpack.c.h.b16 %v1121
        %v1207 = vunpack.c.l.b16 %v1122
        %v1208 = vunpack.c.l.b16 %v1123
        %v1209 = vunpack.c.h.b16 %v1123
        %v1210 = vunpack.c.l.b16 %v1124
        %v1211 = vunpack.c.l.b16 %v1125
        %v1212 = vunpack.c.h.b16 %v1125
        %v1213 = vunpack.c.l.b16 %v1126
        %v1214 = vunpack.c.l.b16 %v1127
        %v1215 = vunpack.c.h.b16 %v1127
        %v1216 = vunpack.c.l.b16 %v1128
        %v1217 = vunpack.c.l.b16 %v1129
        %v1218 = vunpack.c.h.b16 %v1129
        %v1219 = vunpack.c.l.b16 %v1130
        %v1220 = vunpack.c.l.b16 %v1131
        %v1221 = vunpack.c.h.b16 %v1131
        %v1222 = vunpack.c.l.b16 %v1132
        %v1223 = vunpack.c.l.b16 %v1133
        %v1224 = vunpack.c.h.b16 %v1133
        %v1225 = vunpack.c.l.b16 %v1134
        %v1226 = vunpack.c.l.b16 %v1135
        %v1227 = vunpack.c.h.b16 %v1135
        %v1228 = vunpack.c.l.b16 %v1136
        %v1229 = vunpack.c.l.b16 %v1137
        %v1230 = vunpack.c.h.b16 %v1137
        %v1231 = vunpack.c.l.b16 %v1138
        %v1232 = vunpack.c.l.b16 %v1139
        %v1233 = vunpack.c.h.b16 %v1139
        %v1234 = vunpack.c.l.b16 %v1140
        %v1235 = vunpack.c.l.b16 %v1141
        %v1236 = vunpack.c.h.b16 %v1141
        %v1237 = vunpack.c.l.b16 %v1142
        %v1238 = vunpack.c.l.b16 %v1143
        %v1239 = vunpack.c.h.b16 %v1143
        %v1240 = vunpack.c.l.b16 %v1144
        %v1241 = vunpack.c.l.b16 %v1145
        %v1242 = vunpack.c.h.b16 %v1145
        %v1243 = vunpack.c.l.b16 %v1146
        %v1244 = vunpack.c.l.b16 %v1147
        %v1245 = vunpack.c.h.b16 %v1147
        %v1246 = vunpack.c.l.b16 %v1148
        %v1247 = vpack.c.b16 %v1202, %v1199
        %v1248 = vpack.c.b16 %v1203, %v1200
        %v1249 = vpack.c.b16 %v1204, %v1201
        %v1250 = vpack.c.b16 %v1208, %v1205
        %v1251 = vpack.c.b16 %v1209, %v1206
        %v1252 = vpack.c.b16 %v1210, %v1207
        %v1253 = vpack.c.b16 %v1214, %v1211
        %v1254 = vpack.c.b16 %v1215, %v1212
        %v1255 = vpack.c.b16 %v1216, %v1213
        %v1256 = vpack.c.b16 %v1220, %v1217
        %v1257 = vpack.c.b16 %v1221, %v1218
        %v1258 = vpack.c.b16 %v1222, %v1219
        %v1259 = vpack.c.b16 %v1226, %v1223
        %v1260 = vpack.c.b16 %v1227, %v1224
        %v1261 = vpack.c.b16 %v1228, %v1225
        %v1262 = vpack.c.b16 %v1232, %v1229
        %v1263 = vpack.c.b16 %v1233, %v1230
        %v1264 = vpack.c.b16 %v1234, %v1231
        %v1265 = vpack.c.b16 %v1238, %v1235
        %v1266 = vpack.c.b16 %v1239, %v1236
        %v1267 = vpack.c.b16 %v1240, %v1237
        %v1268 = vpack.c.b16 %v1244, %v1241
        %v1269 = vpack.c.b16 %v1245, %v1242
        %v1270 = vpack.c.b16 %v1246, %v1243
        %1295 = vmatprep.subr.bf16.mxu0 %v1248
        %1296 = vmatpush1.bf16.msra.mxu0 %v1247
        %1297 = vmatprep.subr.bf16.mxu0 %v1251
        %1298 = vmatpush1.bf16.msra.mxu0 %v1250
        %1299 = vmatprep.subr.bf16.mxu0 %v1254
        %1300 = vmatpush1.bf16.msra.mxu0 %v1253
        %1301 = vmatprep.subr.bf16.mxu0 %v1257
        %1302 = vmatpush1.bf16.msra.mxu0 %v1256
        %1303 = vmatprep.subr.bf16.mxu0 %v1260
        %1304 = vmatpush1.bf16.msra.mxu0 %v1259
        %1305 = vmatprep.subr.bf16.mxu0 %v1263
        %1306 = vmatpush1.bf16.msra.mxu0 %v1262
        %1307 = vmatprep.subr.bf16.mxu0 %v1266
        %1308 = vmatpush1.bf16.msra.mxu0 %v1265
        %1309 = vmatprep.subr.bf16.mxu0 %v1269
        %1310 = vmatpush1.bf16.msra.mxu0 %v1268
        %1311 = vmatprep.subr.bf16.mxu0 0
        %1312 = vmatpush1.bf16.msra.mxu0 0
        %1313 = vmatprep.subr.bf16.mxu0 0
        %1314 = vmatpush1.bf16.msra.mxu0 0
        %1315 = vmatprep.subr.bf16.mxu0 0
        %1316 = vmatpush1.bf16.msra.mxu0 0
        %1317 = vmatprep.subr.bf16.mxu0 0
        %1318 = vmatpush1.bf16.msra.mxu0 0
        %1319 = vmatprep.subr.bf16.mxu0 0
        %1320 = vmatpush1.bf16.msra.mxu0 0
        %1321 = vmatprep.subr.bf16.mxu0 0
        %1322 = vmatpush1.bf16.msra.mxu0 0
        %1323 = vmatprep.subr.bf16.mxu0 0
        %1324 = vmatpush1.bf16.msra.mxu0 0
        %1325 = vmatprep.subr.bf16.mxu0 0
        %1326 = vmatpush1.bf16.msra.mxu0 0
        %1327 = vmatprep.mubr.bf16.mxu0 0
        %1328 = vmatmul.mubr.bf16.gmra.mrb[0].mxu0 %v1150
        %v1329 = vpop.f32.mrb[0].mxu0
        %v1330 = vadd.f32 %v1155, %v1329
        %v1331 = vpop.f32.mrb[0].mxu0
        %v1332 = vadd.f32 %v1159, %v1331
        %v1333 = vpop.f32.mrb[0].mxu0
        %v1334 = vadd.f32 %v1155, %v1333
        %v1335 = vpop.f32.mrb[0].mxu0
        %v1336 = vadd.f32 %v1159, %v1335
        %1337 = vdwg.mxu0
        %1338 = vmatprep.subr.bf16.mxu0 0
        %1339 = vmatpush1.bf16.msra.mxu0 %v1249
        %1340 = vmatprep.subr.bf16.mxu0 0
        %1341 = vmatpush1.bf16.msra.mxu0 %v1252
        %1342 = vmatprep.subr.bf16.mxu0 0
        %1343 = vmatpush1.bf16.msra.mxu0 %v1255
        %1344 = vmatprep.subr.bf16.mxu0 0
        %1345 = vmatpush1.bf16.msra.mxu0 %v1258
        %1346 = vmatprep.subr.bf16.mxu0 0
        %1347 = vmatpush1.bf16.msra.mxu0 %v1261
        %1348 = vmatprep.subr.bf16.mxu0 0
        %1349 = vmatpush1.bf16.msra.mxu0 %v1264
        %1350 = vmatprep.subr.bf16.mxu0 0
        %1351 = vmatpush1.bf16.msra.mxu0 %v1267
        %1352 = vmatprep.subr.bf16.mxu0 0
        %1353 = vmatpush1.bf16.msra.mxu0 %v1270
        %1354 = vmatprep.subr.bf16.mxu0 0
        %1355 = vmatpush1.bf16.msra.mxu0 0
        %1356 = vmatprep.subr.bf16.mxu0 0
        %1357 = vmatpush1.bf16.msra.mxu0 0
        %1358 = vmatprep.subr.bf16.mxu0 0
        %1359 = vmatpush1.bf16.msra.mxu0 0
        %1360 = vmatprep.subr.bf16.mxu0 0
        %1361 = vmatpush1.bf16.msra.mxu0 0
        %1362 = vmatprep.subr.bf16.mxu0 0
        %1363 = vmatpush1.bf16.msra.mxu0 0
        %1364 = vmatprep.subr.bf16.mxu0 0
        %1365 = vmatpush1.bf16.msra.mxu0 0
        %1366 = vmatprep.subr.bf16.mxu0 0
        %1367 = vmatpush1.bf16.msra.mxu0 0
        %1368 = vmatprep.subr.bf16.mxu0 0
        %1369 = vmatpush1.bf16.msra.mxu0 0
        %1370 = vmatprep.mubr.bf16.mxu0 0
        %1371 = vmatmul.mubr.bf16.gmra.mrb[0].mxu0 %v1150
        %v1372 = vpop.f32.mrb[0].mxu0
        %v1373 = vadd.f32 %v1163, %v1372
        %v1374 = vpop.f32.mrb[0].mxu0
        %v1375 = vpop.f32.mrb[0].mxu0
        %v1376 = vadd.f32 %v1163, %v1375
        %v1377 = vpop.f32.mrb[0].mxu0
        %1378 = vdwg.mxu0
        %v1379 = vpack.c.bf16 %v1336, %v1332
        %v1380 = vlaneseq
        %v1381 = vand.u32 %v1380, 127
        %vm1382 = vcmp.ge.s32.totalorder %v1381, 0
        %vm1383 = vcmp.lt.s32.totalorder %v1381, 64
        %vm1384 = vmand %vm1382, %vm1383
        %v1385 = vsel %vm1384, 1, 0
        %v1386 = vcvt.s32.f32 %v1385
        %v1387 = vmul.f32 %v1330, %v1386
        %v1388 = vmul.f32 %v1334, %v1386
        %v1389 = vpack.c.bf16 %v1388, %v1387
        %1390 = vmatprep.subr.bf16.mxu0 0
        %1391 = vmatpush1.bf16.xpose.msra.mxu0 %v1379
        %1392 = vmatprep.subr.bf16.mxu0 0
        %1393 = vmatpush1.bf16.xpose.msra.mxu0 0
        %1394 = vmatprep.subr.bf16.mxu0 0
        %1395 = vmatpush1.bf16.xpose.msra.mxu0 0
        %1396 = vmatprep.subr.bf16.mxu0 0
        %1397 = vmatpush1.bf16.xpose.msra.mxu0 0
        %1398 = vmatprep.subr.bf16.mxu0 0
        %1399 = vmatpush1.bf16.xpose.msra.mxu0 0
        %1400 = vmatprep.subr.bf16.mxu0 0
        %1401 = vmatpush1.bf16.xpose.msra.mxu0 0
        %1402 = vmatprep.subr.bf16.mxu0 0
        %1403 = vmatpush1.bf16.xpose.msra.mxu0 0
        %1404 = vmatprep.subr.bf16.mxu0 0
        %1405 = vmatpush1.bf16.xpose.msra.mxu0 0
        %1406 = vmatprep.subr.bf16.mxu0 0
        %1407 = vmatpush1.bf16.xpose.msra.mxu0 0
        %1408 = vmatprep.subr.bf16.mxu0 0
        %1409 = vmatpush1.bf16.xpose.msra.mxu0 0
        %1410 = vmatprep.subr.bf16.mxu0 0
        %1411 = vmatpush1.bf16.xpose.msra.mxu0 0
        %1412 = vmatprep.subr.bf16.mxu0 0
        %1413 = vmatpush1.bf16.xpose.msra.mxu0 0
        %1414 = vmatprep.subr.bf16.mxu0 0
        %1415 = vmatpush1.bf16.xpose.msra.mxu0 0
        %1416 = vmatprep.subr.bf16.mxu0 0
        %1417 = vmatpush1.bf16.xpose.msra.mxu0 0
        %1418 = vmatprep.subr.bf16.mxu0 0
        %1419 = vmatpush1.bf16.xpose.msra.mxu0 0
        %1420 = vmatprep.subr.bf16.mxu0 0
        %1421 = vmatpush1.bf16.xpose.msra.mxu0 0
        %1422 = vmatprep.mubr.bf16.mxu0 0
        %1423 = vmatmul.mubr.bf16.gmra.mrb[0].mxu0 %v1389
        %v1424 = vpop.f32.mrb[0].mxu0
        %v1425 = vadd.f32 0.0, %v1424
        %v1426 = vpop.f32.mrb[0].mxu0
        %v1427 = vpop.f32.mrb[0].mxu0
        %v1428 = vadd.f32 0.0, %v1427
        %v1429 = vpop.f32.mrb[0].mxu0
        %1430 = vdwg.mxu0
        %v1431 = vmul.f32 %v1425, 0.125
        %v1432 = vmul.f32 %v1428, 0.125
        %v1433 = vadd.f32 %v1431, %v1115
        %v1434 = vadd.f32 %v1432, %v1116
        %vm1435 = vcmask 130048
        %v1436 = vsel %vm1435, %v1433, -inf
        %1437 = vmax.xlane.f32.xlu0 %v1436
        %v1438 = vpop.xlane.xlu0 %1437
        %v1439 = vsel %vm1435, %v1434, -inf
        %1440 = vmax.xlane.f32.xlu0 %v1439
        %v1441 = vpop.xlane.xlu0 %1440
        %v1442 = vsub.f32 %v1433, %v1438
        %v1443 = vsub.f32 %v1434, %v1441
        %v1444 = vmul.f32 %v1442, 1.442695
        %v1445 = vpow.pop %v1444
        %v1446 = vmul.f32 %v1443, 1.442695
        %v1447 = vpow.pop %v1446
        %v1448 = vsel %vm1435, %v1445, 0.0
        %1449 = vadd.xlane.f32.xlu0 %v1448
        %v1450 = vpop.xlane.xlu0 %1449
        %v1451 = vsel %vm1435, %v1447, 0.0
        %1452 = vadd.xlane.f32.xlu0 %v1451
        %v1453 = vpop.xlane.xlu0 %1452
        %v1454 = vrcp.pop %v1450
        %v1455 = vrcp.pop %v1453
        %v1456 = vmul.f32 %v1445, %v1454
        %v1457 = vmul.f32 %v1447, %v1455
        %v1458 = vmul.f32 %v1373, %v1386
        %v1459 = vmul.f32 %v1376, %v1386
        %v1460 = vpack.c.bf16 %v1459, %v1458
        %v1461 = vpack.c.bf16 %v1457, %v1456
        %vm1462 = vcmp.ge.s32.totalorder %v1381, 64
        %vm1463 = vcmp.lt.s32.totalorder %v1381, 128
        %vm1464 = vmand %vm1462, %vm1463
        %v1465 = vsel %vm1464, 1, 0
        %v1466 = vcvt.s32.f32 %v1465
        %v1467 = vmul.f32 %v1330, %v1466
        %v1468 = vmul.f32 %v1334, %v1466
        %v1469 = vpack.c.bf16 %v1468, %v1467
        %1470 = vmatprep.subr.bf16.mxu0 0
        %1471 = vmatpush1.bf16.xpose.msra.mxu0 %v1379
        %1472 = vmatprep.subr.bf16.mxu0 0
        %1473 = vmatpush1.bf16.xpose.msra.mxu0 0
        %1474 = vmatprep.subr.bf16.mxu0 0
        %1475 = vmatpush1.bf16.xpose.msra.mxu0 0
        %1476 = vmatprep.subr.bf16.mxu0 0
        %1477 = vmatpush1.bf16.xpose.msra.mxu0 0
        %1478 = vmatprep.subr.bf16.mxu0 0
        %1479 = vmatpush1.bf16.xpose.msra.mxu0 0
        %1480 = vmatprep.subr.bf16.mxu0 0
        %1481 = vmatpush1.bf16.xpose.msra.mxu0 0
        %1482 = vmatprep.subr.bf16.mxu0 0
        %1483 = vmatpush1.bf16.xpose.msra.mxu0 0
        %1484 = vmatprep.subr.bf16.mxu0 0
        %1485 = vmatpush1.bf16.xpose.msra.mxu0 0
        %1486 = vmatprep.subr.bf16.mxu0 0
        %1487 = vmatpush1.bf16.xpose.msra.mxu0 0
        %1488 = vmatprep.subr.bf16.mxu0 0
        %1489 = vmatpush1.bf16.xpose.msra.mxu0 0
        %1490 = vmatprep.subr.bf16.mxu0 0
        %1491 = vmatpush1.bf16.xpose.msra.mxu0 0
        %1492 = vmatprep.subr.bf16.mxu0 0
        %1493 = vmatpush1.bf16.xpose.msra.mxu0 0
        %1494 = vmatprep.subr.bf16.mxu0 0
        %1495 = vmatpush1.bf16.xpose.msra.mxu0 0
        %1496 = vmatprep.subr.bf16.mxu0 0
        %1497 = vmatpush1.bf16.xpose.msra.mxu0 0
        %1498 = vmatprep.subr.bf16.mxu0 0
        %1499 = vmatpush1.bf16.xpose.msra.mxu0 0
        %1500 = vmatprep.subr.bf16.mxu0 0
        %1501 = vmatpush1.bf16.xpose.msra.mxu0 0
        %1502 = vmatprep.mubr.bf16.mxu0 0
        %1503 = vmatmul.mubr.bf16.gmra.mrb[0].mxu0 %v1469
        %v1504 = vpop.f32.mrb[0].mxu0
        %v1505 = vadd.f32 0.0, %v1504
        %v1506 = vpop.f32.mrb[0].mxu0
        %v1507 = vpop.f32.mrb[0].mxu0
        %v1508 = vadd.f32 0.0, %v1507
        %v1509 = vpop.f32.mrb[0].mxu0
        %1510 = vdwg.mxu0
        %v1511 = vmul.f32 %v1505, 0.125
        %v1512 = vmul.f32 %v1508, 0.125
        %v1513 = vadd.f32 %v1511, %v1115
        %v1514 = vadd.f32 %v1512, %v1116
        %v1515 = vsel %vm1435, %v1513, -inf
        %1516 = vmax.xlane.f32.xlu0 %v1515
        %v1517 = vpop.xlane.xlu0 %1516
        %v1518 = vsel %vm1435, %v1514, -inf
        %1519 = vmax.xlane.f32.xlu0 %v1518
        %v1520 = vpop.xlane.xlu0 %1519
        %v1521 = vsub.f32 %v1513, %v1517
        %v1522 = vsub.f32 %v1514, %v1520
        %v1523 = vmul.f32 %v1521, 1.442695
        %v1524 = vpow.pop %v1523
        %v1525 = vmul.f32 %v1522, 1.442695
        %v1526 = vpow.pop %v1525
        %v1527 = vsel %vm1435, %v1524, 0.0
        %1528 = vadd.xlane.f32.xlu0 %v1527
        %v1529 = vpop.xlane.xlu0 %1528
        %v1530 = vsel %vm1435, %v1526, 0.0
        %1531 = vadd.xlane.f32.xlu0 %v1530
        %v1532 = vpop.xlane.xlu0 %1531
        %v1533 = vrcp.pop %v1529
        %v1534 = vrcp.pop %v1532
        %v1535 = vmul.f32 %v1524, %v1533
        %v1536 = vmul.f32 %v1526, %v1534
        %v1537 = vmul.f32 %v1373, %v1466
        %v1538 = vmul.f32 %v1376, %v1466
        %v1539 = vpack.c.bf16 %v1538, %v1537
        %v1540 = vpack.c.bf16 %v1536, %v1535
        %v1542 = vsel %vm1435, %v1540, 0
        %1544 = vmatprep.subr.bf16.mxu0 0
        %1545 = vmatpush1.bf16.msra.mxu0 %v1539
        %1546 = vmatprep.subr.bf16.mxu0 0
        %1547 = vmatpush1.bf16.msra.mxu0 0
        %1548 = vmatprep.subr.bf16.mxu0 0
        %1549 = vmatpush1.bf16.msra.mxu0 0
        %1550 = vmatprep.subr.bf16.mxu0 0
        %1551 = vmatpush1.bf16.msra.mxu0 0
        %1552 = vmatprep.subr.bf16.mxu0 0
        %1553 = vmatpush1.bf16.msra.mxu0 0
        %1554 = vmatprep.subr.bf16.mxu0 0
        %1555 = vmatpush1.bf16.msra.mxu0 0
        %1556 = vmatprep.subr.bf16.mxu0 0
        %1557 = vmatpush1.bf16.msra.mxu0 0
        %1558 = vmatprep.subr.bf16.mxu0 0
        %1559 = vmatpush1.bf16.msra.mxu0 0
        %1560 = vmatprep.subr.bf16.mxu0 0
        %1561 = vmatpush1.bf16.msra.mxu0 0
        %1562 = vmatprep.subr.bf16.mxu0 0
        %1563 = vmatpush1.bf16.msra.mxu0 0
        %1564 = vmatprep.subr.bf16.mxu0 0
        %1565 = vmatpush1.bf16.msra.mxu0 0
        %1566 = vmatprep.subr.bf16.mxu0 0
        %1567 = vmatpush1.bf16.msra.mxu0 0
        %1568 = vmatprep.subr.bf16.mxu0 0
        %1569 = vmatpush1.bf16.msra.mxu0 0
        %1570 = vmatprep.subr.bf16.mxu0 0
        %1571 = vmatpush1.bf16.msra.mxu0 0
        %1572 = vmatprep.subr.bf16.mxu0 0
        %1573 = vmatpush1.bf16.msra.mxu0 0
        %1574 = vmatprep.subr.bf16.mxu0 0
        %1575 = vmatpush1.bf16.msra.mxu0 0
        %1576 = vmatprep.mubr.bf16.mxu0 0
        %1577 = vmatmul.mubr.bf16.gmra.mrb[0].mxu0 %v1542
        %v1578 = vpop.f32.mrb[0].mxu0
        %v1579 = vadd.f32 0.0, %v1578
        %v1580 = vpop.f32.mrb[0].mxu0
        %v1581 = vpop.f32.mrb[0].mxu0
        %v1582 = vadd.f32 0.0, %v1581
        %v1583 = vpop.f32.mrb[0].mxu0
        %1584 = vdwg.mxu0
        %v1586 = vsel %vm1435, %v1461, 0
        %1588 = vmatprep.subr.bf16.mxu0 0
        %1589 = vmatpush1.bf16.msra.mxu0 %v1460
        %1590 = vmatprep.subr.bf16.mxu0 0
        %1591 = vmatpush1.bf16.msra.mxu0 0
        %1592 = vmatprep.subr.bf16.mxu0 0
        %1593 = vmatpush1.bf16.msra.mxu0 0
        %1594 = vmatprep.subr.bf16.mxu0 0
        %1595 = vmatpush1.bf16.msra.mxu0 0
        %1596 = vmatprep.subr.bf16.mxu0 0
        %1597 = vmatpush1.bf16.msra.mxu0 0
        %1598 = vmatprep.subr.bf16.mxu0 0
        %1599 = vmatpush1.bf16.msra.mxu0 0
        %1600 = vmatprep.subr.bf16.mxu0 0
        %1601 = vmatpush1.bf16.msra.mxu0 0
        %1602 = vmatprep.subr.bf16.mxu0 0
        %1603 = vmatpush1.bf16.msra.mxu0 0
        %1604 = vmatprep.subr.bf16.mxu0 0
        %1605 = vmatpush1.bf16.msra.mxu0 0
        %1606 = vmatprep.subr.bf16.mxu0 0
        %1607 = vmatpush1.bf16.msra.mxu0 0
        %1608 = vmatprep.subr.bf16.mxu0 0
        %1609 = vmatpush1.bf16.msra.mxu0 0
        %1610 = vmatprep.subr.bf16.mxu0 0
        %1611 = vmatpush1.bf16.msra.mxu0 0
        %1612 = vmatprep.subr.bf16.mxu0 0
        %1613 = vmatpush1.bf16.msra.mxu0 0
        %1614 = vmatprep.subr.bf16.mxu0 0
        %1615 = vmatpush1.bf16.msra.mxu0 0
        %1616 = vmatprep.subr.bf16.mxu0 0
        %1617 = vmatpush1.bf16.msra.mxu0 0
        %1618 = vmatprep.subr.bf16.mxu0 0
        %1619 = vmatpush1.bf16.msra.mxu0 0
        %1620 = vmatprep.mubr.bf16.mxu0 0
        %1621 = vmatmul.mubr.bf16.gmra.mrb[0].mxu0 %v1586
        %v1622 = vpop.f32.mrb[0].mxu0
        %v1623 = vadd.f32 %v1579, %v1622
        %v1624 = vpop.f32.mrb[0].mxu0
        %v1625 = vpop.f32.mrb[0].mxu0
        %v1626 = vadd.f32 %v1582, %v1625
        %v1627 = vpop.f32.mrb[0].mxu0
        %1628 = vdwg.mxu0
        %v1629 = vld [vmem:[%s885] sm:$0xf]
        %v1630 = vld [vmem:[%s885 + $0x4] sm:$0xf]
        %v1631 = vld [vmem:[%s885 + $0x8] sm:$0xf]
        %v1632 = vld [vmem:[%s885 + $0xc] sm:$0xf]
        %v1633 = vld [vmem:[%s885 + $0x10] sm:$0xf]
        %v1634 = vld [vmem:[%s885 + $0x14] sm:$0xf]
        %v1635 = vld [vmem:[%s885 + $0x18] sm:$0xf]
        %v1636 = vld [vmem:[%s885 + $0x1c] sm:$0xf]
        %v1637 = vld [vmem:[%s885 + $0x20] sm:$0xf]
        %v1638 = vld [vmem:[%s885 + $0x24] sm:$0xf]
        %v1639 = vld [vmem:[%s885 + $0x28] sm:$0xf]
        %v1640 = vld [vmem:[%s885 + $0x2c] sm:$0xf]
        %v1641 = vld [vmem:[%s885 + $0x30] sm:$0xf]
        %v1642 = vld [vmem:[%s885 + $0x34] sm:$0xf]
        %v1643 = vld [vmem:[%s885 + $0x38] sm:$0xf]
        %v1644 = vld [vmem:[%s885 + $0x3c] sm:$0xf]
        %v1645 = vld [vmem:[%s893] sm:$0x1]
        %v1646 = vpack.c.bf16 %v1626, %v1623
        %v1648 = vlaneseq
        %v1649 = vshrl.u32 %v1648, 7
        %v1650 = vsub.s32 0, %v1649
        %v1651 = vrot.slane %v1645, %v1650
        %v1669 = vunpack.c.l.b16 %v1629
        %v1670 = vunpack.c.l.b16 %v1630
        %v1671 = vunpack.c.l.b16 %v1631
        %v1672 = vunpack.c.l.b16 %v1632
        %v1673 = vunpack.c.l.b16 %v1633
        %v1674 = vunpack.c.l.b16 %v1634
        %v1675 = vunpack.c.l.b16 %v1635
        %v1676 = vunpack.c.l.b16 %v1636
        %v1677 = vunpack.c.l.b16 %v1637
        %v1678 = vunpack.c.l.b16 %v1638
        %v1679 = vunpack.c.l.b16 %v1639
        %v1680 = vunpack.c.l.b16 %v1640
        %v1681 = vunpack.c.l.b16 %v1641
        %v1682 = vunpack.c.l.b16 %v1642
        %v1683 = vunpack.c.l.b16 %v1643
        %v1684 = vunpack.c.l.b16 %v1644
        %v1685 = vpack.c.b16 %v1670, %v1669
        %v1686 = vpack.c.b16 %v1672, %v1671
        %v1687 = vpack.c.b16 %v1674, %v1673
        %v1688 = vpack.c.b16 %v1676, %v1675
        %v1689 = vpack.c.b16 %v1678, %v1677
        %v1690 = vpack.c.b16 %v1680, %v1679
        %v1691 = vpack.c.b16 %v1682, %v1681
        %v1692 = vpack.c.b16 %v1684, %v1683
        %1701 = vmatprep.subr.bf16.mxu0 0
        %1702 = vmatpush1.bf16.msra.mxu0 %v1685
        %1703 = vmatprep.subr.bf16.mxu0 0
        %1704 = vmatpush1.bf16.msra.mxu0 %v1686
        %1705 = vmatprep.subr.bf16.mxu0 0
        %1706 = vmatpush1.bf16.msra.mxu0 %v1687
        %1707 = vmatprep.subr.bf16.mxu0 0
        %1708 = vmatpush1.bf16.msra.mxu0 %v1688
        %1709 = vmatprep.subr.bf16.mxu0 0
        %1710 = vmatpush1.bf16.msra.mxu0 %v1689
        %1711 = vmatprep.subr.bf16.mxu0 0
        %1712 = vmatpush1.bf16.msra.mxu0 %v1690
        %1713 = vmatprep.subr.bf16.mxu0 0
        %1714 = vmatpush1.bf16.msra.mxu0 %v1691
        %1715 = vmatprep.subr.bf16.mxu0 0
        %1716 = vmatpush1.bf16.msra.mxu0 %v1692
        %1717 = vmatprep.subr.bf16.mxu0 0
        %1718 = vmatpush1.bf16.msra.mxu0 0
        %1719 = vmatprep.subr.bf16.mxu0 0
        %1720 = vmatpush1.bf16.msra.mxu0 0
        %1721 = vmatprep.subr.bf16.mxu0 0
        %1722 = vmatpush1.bf16.msra.mxu0 0
        %1723 = vmatprep.subr.bf16.mxu0 0
        %1724 = vmatpush1.bf16.msra.mxu0 0
        %1725 = vmatprep.subr.bf16.mxu0 0
        %1726 = vmatpush1.bf16.msra.mxu0 0
        %1727 = vmatprep.subr.bf16.mxu0 0
        %1728 = vmatpush1.bf16.msra.mxu0 0
        %1729 = vmatprep.subr.bf16.mxu0 0
        %1730 = vmatpush1.bf16.msra.mxu0 0
        %1731 = vmatprep.subr.bf16.mxu0 0
        %1732 = vmatpush1.bf16.msra.mxu0 0
        %1733 = vmatprep.mubr.bf16.mxu0 0
        %1734 = vmatmul.mubr.bf16.gmra.mrb[0].mxu0 %v1646
        %v1735 = vpop.f32.mrb[0].mxu0
        %v1736 = vadd.f32 %v1651, %v1735
        %v1737 = vpop.f32.mrb[0].mxu0
        %v1738 = vpop.f32.mrb[0].mxu0
        %v1739 = vadd.f32 %v1651, %v1738
        %v1740 = vpop.f32.mrb[0].mxu0
        %1741 = vdwg.mxu0
        %v1742 = vadd.f32 %v1736, %v1113
        %v1743 = vadd.f32 %v1739, %v1114
        %v1744 = vld [vmem:[%s901] sm:$0x1]
        %v1745 = vld [vmem:[%s909] sm:$0x1]
        %1746 = vadd.xlane.f32.xlu0 %v1742
        %v1747 = vpop.xlane.xlu0 %1746
        %1748 = vadd.xlane.f32.xlu0 %v1743
        %v1749 = vpop.xlane.xlu0 %1748
        %v1750 = vrcp.pop 128.0
        %v1751 = vmul.f32 %v1747, %v1750
        %v1752 = vmul.f32 %v1749, %v1750
        %v1753 = vsub.f32 %v1742, %v1751
        %v1754 = vsub.f32 %v1743, %v1752
        %v1755 = vmul.f32 %v1753, %v1753
        %v1756 = vmul.f32 %v1754, %v1754
        %1757 = vadd.xlane.f32.xlu0 %v1755
        %v1758 = vpop.xlane.xlu0 %1757
        %1759 = vadd.xlane.f32.xlu0 %v1756
        %v1760 = vpop.xlane.xlu0 %1759
        %v1761 = vmul.f32 %v1758, %v1750
        %v1762 = vmul.f32 %v1760, %v1750
        %v1763 = vadd.f32 %v1761, 1e-12
        %v1764 = vadd.f32 %v1762, 1e-12
        %v1765 = vrsqrt.pop %v1763
        %v1766 = vrsqrt.pop %v1764
        %v1767 = vmul.f32 %v1753, %v1765
        %v1768 = vmul.f32 %v1754, %v1766
        %v1770 = vlaneseq
        %v1771 = vshrl.u32 %v1770, 7
        %v1772 = vsub.s32 0, %v1771
        %v1773 = vrot.slane %v1744, %v1772
        %v1775 = vmul.f32 %v1767, %v1773
        %v1776 = vmul.f32 %v1768, %v1773
        %v1778 = vlaneseq
        %v1779 = vshrl.u32 %v1778, 7
        %v1780 = vsub.s32 0, %v1779
        %v1781 = vrot.slane %v1745, %v1780
        %v1783 = vadd.f32 %v1775, %v1781
        %v1784 = vadd.f32 %v1776, %v1781
        %v1785 = vld [vmem:[%s918] sm:$0xff]
        %v1786 = vld [vmem:[%s918 + $0x8] sm:$0xff]
        %v1787 = vld [vmem:[%s918 + $0x10] sm:$0xff]
        %v1788 = vld [vmem:[%s918 + $0x18] sm:$0xff]
        %v1789 = vld [vmem:[%s918 + $0x20] sm:$0xff]
        %v1790 = vld [vmem:[%s918 + $0x28] sm:$0xff]
        %v1791 = vld [vmem:[%s918 + $0x30] sm:$0xff]
        %v1792 = vld [vmem:[%s918 + $0x38] sm:$0xff]
        %v1793 = vld [vmem:[%s918 + $0x40] sm:$0xff]
        %v1794 = vld [vmem:[%s918 + $0x48] sm:$0xff]
        %v1795 = vld [vmem:[%s918 + $0x50] sm:$0xff]
        %v1796 = vld [vmem:[%s918 + $0x58] sm:$0xff]
        %v1797 = vld [vmem:[%s918 + $0x60] sm:$0xff]
        %v1798 = vld [vmem:[%s918 + $0x68] sm:$0xff]
        %v1799 = vld [vmem:[%s918 + $0x70] sm:$0xff]
        %v1800 = vld [vmem:[%s918 + $0x78] sm:$0xff]
        %v1801 = vld [vmem:[%s1062] sm:$0x3]
        %v1802 = vpack.c.bf16 %v1784, %v1783
        %v1804 = vlaneseq
        %v1805 = vshrl.u32 %v1804, 7
        %v1806 = vsub.s32 0, %v1805
        %v1807 = vrot.slane %v1801, %v1806
        %v1808 = vlaneseq
        %v1809 = vshrl.u32 %v1808, 7
        %v1810 = vsub.s32 1, %v1809
        %v1811 = vrot.slane %v1801, %v1810
        %v1830 = vunpack.c.l.b16 %v1785
        %v1831 = vunpack.c.h.b16 %v1785
        %v1832 = vunpack.c.l.b16 %v1786
        %v1833 = vunpack.c.h.b16 %v1786
        %v1834 = vunpack.c.l.b16 %v1787
        %v1835 = vunpack.c.h.b16 %v1787
        %v1836 = vunpack.c.l.b16 %v1788
        %v1837 = vunpack.c.h.b16 %v1788
        %v1838 = vunpack.c.l.b16 %v1789
        %v1839 = vunpack.c.h.b16 %v1789
        %v1840 = vunpack.c.l.b16 %v1790
        %v1841 = vunpack.c.h.b16 %v1790
        %v1842 = vunpack.c.l.b16 %v1791
        %v1843 = vunpack.c.h.b16 %v1791
        %v1844 = vunpack.c.l.b16 %v1792
        %v1845 = vunpack.c.h.b16 %v1792
        %v1846 = vunpack.c.l.b16 %v1793
        %v1847 = vunpack.c.h.b16 %v1793
        %v1848 = vunpack.c.l.b16 %v1794
        %v1849 = vunpack.c.h.b16 %v1794
        %v1850 = vunpack.c.l.b16 %v1795
        %v1851 = vunpack.c.h.b16 %v1795
        %v1852 = vunpack.c.l.b16 %v1796
        %v1853 = vunpack.c.h.b16 %v1796
        %v1854 = vunpack.c.l.b16 %v1797
        %v1855 = vunpack.c.h.b16 %v1797
        %v1856 = vunpack.c.l.b16 %v1798
        %v1857 = vunpack.c.h.b16 %v1798
        %v1858 = vunpack.c.l.b16 %v1799
        %v1859 = vunpack.c.h.b16 %v1799
        %v1860 = vunpack.c.l.b16 %v1800
        %v1861 = vunpack.c.h.b16 %v1800
        %v1862 = vpack.c.b16 %v1832, %v1830
        %v1863 = vpack.c.b16 %v1833, %v1831
        %v1864 = vpack.c.b16 %v1836, %v1834
        %v1865 = vpack.c.b16 %v1837, %v1835
        %v1866 = vpack.c.b16 %v1840, %v1838
        %v1867 = vpack.c.b16 %v1841, %v1839
        %v1868 = vpack.c.b16 %v1844, %v1842
        %v1869 = vpack.c.b16 %v1845, %v1843
        %v1870 = vpack.c.b16 %v1848, %v1846
        %v1871 = vpack.c.b16 %v1849, %v1847
        %v1872 = vpack.c.b16 %v1852, %v1850
        %v1873 = vpack.c.b16 %v1853, %v1851
        %v1874 = vpack.c.b16 %v1856, %v1854
        %v1875 = vpack.c.b16 %v1857, %v1855
        %v1876 = vpack.c.b16 %v1860, %v1858
        %v1877 = vpack.c.b16 %v1861, %v1859
        %1894 = vmatprep.subr.bf16.mxu0 %v1863
        %1895 = vmatpush1.bf16.msra.mxu0 %v1862
        %1896 = vmatprep.subr.bf16.mxu0 %v1865
        %1897 = vmatpush1.bf16.msra.mxu0 %v1864
        %1898 = vmatprep.subr.bf16.mxu0 %v1867
        %1899 = vmatpush1.bf16.msra.mxu0 %v1866
        %1900 = vmatprep.subr.bf16.mxu0 %v1869
        %1901 = vmatpush1.bf16.msra.mxu0 %v1868
        %1902 = vmatprep.subr.bf16.mxu0 %v1871
        %1903 = vmatpush1.bf16.msra.mxu0 %v1870
        %1904 = vmatprep.subr.bf16.mxu0 %v1873
        %1905 = vmatpush1.bf16.msra.mxu0 %v1872
        %1906 = vmatprep.subr.bf16.mxu0 %v1875
        %1907 = vmatpush1.bf16.msra.mxu0 %v1874
        %1908 = vmatprep.subr.bf16.mxu0 %v1877
        %1909 = vmatpush1.bf16.msra.mxu0 %v1876
        %1910 = vmatprep.subr.bf16.mxu0 0
        %1911 = vmatpush1.bf16.msra.mxu0 0
        %1912 = vmatprep.subr.bf16.mxu0 0
        %1913 = vmatpush1.bf16.msra.mxu0 0
        %1914 = vmatprep.subr.bf16.mxu0 0
        %1915 = vmatpush1.bf16.msra.mxu0 0
        %1916 = vmatprep.subr.bf16.mxu0 0
        %1917 = vmatpush1.bf16.msra.mxu0 0
        %1918 = vmatprep.subr.bf16.mxu0 0
        %1919 = vmatpush1.bf16.msra.mxu0 0
        %1920 = vmatprep.subr.bf16.mxu0 0
        %1921 = vmatpush1.bf16.msra.mxu0 0
        %1922 = vmatprep.subr.bf16.mxu0 0
        %1923 = vmatpush1.bf16.msra.mxu0 0
        %1924 = vmatprep.subr.bf16.mxu0 0
        %1925 = vmatpush1.bf16.msra.mxu0 0
        %1926 = vmatprep.mubr.bf16.mxu0 0
        %1927 = vmatmul.mubr.bf16.gmra.mrb[0].mxu0 %v1802
        %v1928 = vpop.f32.mrb[0].mxu0
        %v1929 = vadd.f32 %v1807, %v1928
        %v1930 = vpop.f32.mrb[0].mxu0
        %v1931 = vadd.f32 %v1811, %v1930
        %v1932 = vpop.f32.mrb[0].mxu0
        %v1933 = vadd.f32 %v1807, %v1932
        %v1934 = vpop.f32.mrb[0].mxu0
        %v1935 = vadd.f32 %v1811, %v1934
        %1936 = vdwg.mxu0
        %v1937 = vmul.f32 %v1929, %v1929
        %v1938 = vmul.f32 %v1931, %v1931
        %v1939 = vmul.f32 %v1933, %v1933
        %v1940 = vmul.f32 %v1935, %v1935
        %v1941 = vmul.f32 %v1929, %v1937
        %v1942 = vmul.f32 %v1931, %v1938
        %v1943 = vmul.f32 %v1933, %v1939
        %v1944 = vmul.f32 %v1935, %v1940
        %v1945 = vmul.f32 %v1941, 0.044715
        %v1946 = vmul.f32 %v1942, 0.044715
        %v1947 = vmul.f32 %v1943, 0.044715
        %v1948 = vmul.f32 %v1944, 0.044715
        %v1949 = vadd.f32 %v1929, %v1945
        %v1950 = vadd.f32 %v1931, %v1946
        %v1951 = vadd.f32 %v1933, %v1947
        %v1952 = vadd.f32 %v1935, %v1948
        %v1953 = vmul.f32 %v1949, 0.7978846
        %v1954 = vmul.f32 %v1950, 0.7978846
        %v1955 = vmul.f32 %v1951, 0.7978846
        %v1956 = vmul.f32 %v1952, 0.7978846
        %v1957 = vtanh.pop %v1953
        %v1958 = vtanh.pop %v1954
        %v1959 = vtanh.pop %v1955
        %v1960 = vtanh.pop %v1956
        %v1961 = vadd.f32 %v1957, 1.0
        %v1962 = vadd.f32 %v1958, 1.0
        %v1963 = vadd.f32 %v1959, 1.0
        %v1964 = vadd.f32 %v1960, 1.0
        %v1965 = vmul.f32 %v1961, 0.5
        %v1966 = vmul.f32 %v1962, 0.5
        %v1967 = vmul.f32 %v1963, 0.5
        %v1968 = vmul.f32 %v1964, 0.5
        %v1969 = vmul.f32 %v1929, %v1965
        %v1970 = vmul.f32 %v1931, %v1966
        %v1971 = vmul.f32 %v1933, %v1967
        %v1972 = vmul.f32 %v1935, %v1968
        %v1973 = vld [vmem:[%s927] sm:$0xf]
        %v1974 = vld [vmem:[%s927 + $0x4] sm:$0xf]
        %v1975 = vld [vmem:[%s927 + $0x8] sm:$0xf]
        %v1976 = vld [vmem:[%s927 + $0xc] sm:$0xf]
        %v1977 = vld [vmem:[%s927 + $0x10] sm:$0xf]
        %v1978 = vld [vmem:[%s927 + $0x14] sm:$0xf]
        %v1979 = vld [vmem:[%s927 + $0x18] sm:$0xf]
        %v1980 = vld [vmem:[%s927 + $0x1c] sm:$0xf]
        %v1981 = vld [vmem:[%s927 + $0x20] sm:$0xf]
        %v1982 = vld [vmem:[%s927 + $0x24] sm:$0xf]
        %v1983 = vld [vmem:[%s927 + $0x28] sm:$0xf]
        %v1984 = vld [vmem:[%s927 + $0x2c] sm:$0xf]
        %v1985 = vld [vmem:[%s927 + $0x30] sm:$0xf]
        %v1986 = vld [vmem:[%s927 + $0x34] sm:$0xf]
        %v1987 = vld [vmem:[%s927 + $0x38] sm:$0xf]
        %v1988 = vld [vmem:[%s927 + $0x3c] sm:$0xf]
        %v1989 = vld [vmem:[%s927 + $0x40] sm:$0xf]
        %v1990 = vld [vmem:[%s927 + $0x44] sm:$0xf]
        %v1991 = vld [vmem:[%s927 + $0x48] sm:$0xf]
        %v1992 = vld [vmem:[%s927 + $0x4c] sm:$0xf]
        %v1993 = vld [vmem:[%s927 + $0x50] sm:$0xf]
        %v1994 = vld [vmem:[%s927 + $0x54] sm:$0xf]
        %v1995 = vld [vmem:[%s927 + $0x58] sm:$0xf]
        %v1996 = vld [vmem:[%s927 + $0x5c] sm:$0xf]
        %v1997 = vld [vmem:[%s927 + $0x60] sm:$0xf]
        %v1998 = vld [vmem:[%s927 + $0x64] sm:$0xf]
        %v1999 = vld [vmem:[%s927 + $0x68] sm:$0xf]
        %v2000 = vld [vmem:[%s927 + $0x6c] sm:$0xf]
        %v2001 = vld [vmem:[%s927 + $0x70] sm:$0xf]
        %v2002 = vld [vmem:[%s927 + $0x74] sm:$0xf]
        %v2003 = vld [vmem:[%s927 + $0x78] sm:$0xf]
        %v2004 = vld [vmem:[%s927 + $0x7c] sm:$0xf]
        %v2005 = vld [vmem:[%s935] sm:$0x1]
        %v2006 = vpack.c.bf16 %v1971, %v1969
        %v2007 = vpack.c.bf16 %v1972, %v1970
        %v2009 = vlaneseq
        %v2010 = vshrl.u32 %v2009, 7
        %v2011 = vsub.s32 0, %v2010
        %v2012 = vrot.slane %v2005, %v2011
        %v2046 = vunpack.c.l.b16 %v1973
        %v2047 = vunpack.c.l.b16 %v1974
        %v2048 = vunpack.c.l.b16 %v1975
        %v2049 = vunpack.c.l.b16 %v1976
        %v2050 = vunpack.c.l.b16 %v1977
        %v2051 = vunpack.c.l.b16 %v1978
        %v2052 = vunpack.c.l.b16 %v1979
        %v2053 = vunpack.c.l.b16 %v1980
        %v2054 = vunpack.c.l.b16 %v1981
        %v2055 = vunpack.c.l.b16 %v1982
        %v2056 = vunpack.c.l.b16 %v1983
        %v2057 = vunpack.c.l.b16 %v1984
        %v2058 = vunpack.c.l.b16 %v1985
        %v2059 = vunpack.c.l.b16 %v1986
        %v2060 = vunpack.c.l.b16 %v1987
        %v2061 = vunpack.c.l.b16 %v1988
        %v2062 = vunpack.c.l.b16 %v1989
        %v2063 = vunpack.c.l.b16 %v1990
        %v2064 = vunpack.c.l.b16 %v1991
        %v2065 = vunpack.c.l.b16 %v1992
        %v2066 = vunpack.c.l.b16 %v1993
        %v2067 = vunpack.c.l.b16 %v1994
        %v2068 = vunpack.c.l.b16 %v1995
        %v2069 = vunpack.c.l.b16 %v1996
        %v2070 = vunpack.c.l.b16 %v1997
        %v2071 = vunpack.c.l.b16 %v1998
        %v2072 = vunpack.c.l.b16 %v1999
        %v2073 = vunpack.c.l.b16 %v2000
        %v2074 = vunpack.c.l.b16 %v2001
        %v2075 = vunpack.c.l.b16 %v2002
        %v2076 = vunpack.c.l.b16 %v2003
        %v2077 = vunpack.c.l.b16 %v2004
        %v2078 = vpack.c.b16 %v2047, %v2046
        %v2079 = vpack.c.b16 %v2049, %v2048
        %v2080 = vpack.c.b16 %v2051, %v2050
        %v2081 = vpack.c.b16 %v2053, %v2052
        %v2082 = vpack.c.b16 %v2055, %v2054
        %v2083 = vpack.c.b16 %v2057, %v2056
        %v2084 = vpack.c.b16 %v2059, %v2058
        %v2085 = vpack.c.b16 %v2061, %v2060
        %v2086 = vpack.c.b16 %v2063, %v2062
        %v2087 = vpack.c.b16 %v2065, %v2064
        %v2088 = vpack.c.b16 %v2067, %v2066
        %v2089 = vpack.c.b16 %v2069, %v2068
        %v2090 = vpack.c.b16 %v2071, %v2070
        %v2091 = vpack.c.b16 %v2073, %v2072
        %v2092 = vpack.c.b16 %v2075, %v2074
        %v2093 = vpack.c.b16 %v2077, %v2076
        %2110 = vmatprep.subr.bf16.mxu0 0
        %2111 = vmatpush1.bf16.msra.mxu0 %v2078
        %2112 = vmatprep.subr.bf16.mxu0 0
        %2113 = vmatpush1.bf16.msra.mxu0 %v2079
        %2114 = vmatprep.subr.bf16.mxu0 0
        %2115 = vmatpush1.bf16.msra.mxu0 %v2080
        %2116 = vmatprep.subr.bf16.mxu0 0
        %2117 = vmatpush1.bf16.msra.mxu0 %v2081
        %2118 = vmatprep.subr.bf16.mxu0 0
        %2119 = vmatpush1.bf16.msra.mxu0 %v2082
        %2120 = vmatprep.subr.bf16.mxu0 0
        %2121 = vmatpush1.bf16.msra.mxu0 %v2083
        %2122 = vmatprep.subr.bf16.mxu0 0
        %2123 = vmatpush1.bf16.msra.mxu0 %v2084
        %2124 = vmatprep.subr.bf16.mxu0 0
        %2125 = vmatpush1.bf16.msra.mxu0 %v2085
        %2126 = vmatprep.subr.bf16.mxu0 0
        %2127 = vmatpush1.bf16.msra.mxu0 %v2086
        %2128 = vmatprep.subr.bf16.mxu0 0
        %2129 = vmatpush1.bf16.msra.mxu0 %v2087
        %2130 = vmatprep.subr.bf16.mxu0 0
        %2131 = vmatpush1.bf16.msra.mxu0 %v2088
        %2132 = vmatprep.subr.bf16.mxu0 0
        %2133 = vmatpush1.bf16.msra.mxu0 %v2089
        %2134 = vmatprep.subr.bf16.mxu0 0
        %2135 = vmatpush1.bf16.msra.mxu0 %v2090
        %2136 = vmatprep.subr.bf16.mxu0 0
        %2137 = vmatpush1.bf16.msra.mxu0 %v2091
        %2138 = vmatprep.subr.bf16.mxu0 0
        %2139 = vmatpush1.bf16.msra.mxu0 %v2092
        %2140 = vmatprep.subr.bf16.mxu0 0
        %2141 = vmatpush1.bf16.msra.mxu0 %v2093
        %2142 = vmatprep.mubr.bf16.mxu0 %v2007
        %2143 = vmatmul.mubr.bf16.gmra.mrb[0].mxu0 %v2006
        %v2144 = vpop.f32.mrb[0].mxu0
        %v2145 = vadd.f32 %v2012, %v2144
        %v2146 = vpop.f32.mrb[0].mxu0
        %v2147 = vpop.f32.mrb[0].mxu0
        %v2148 = vadd.f32 %v2012, %v2147
        %v2149 = vpop.f32.mrb[0].mxu0
        %2150 = vdwg.mxu0
        %v2151 = vadd.f32 %v2145, %v1783
        %v2152 = vadd.f32 %v2148, %v1784
        %v2153 = vld [vmem:[%s943] sm:$0x1]
        %v2154 = vld [vmem:[%s951] sm:$0x1]
        %2155 = vadd.xlane.f32.xlu0 %v2151
        %v2156 = vpop.xlane.xlu0 %2155
        %2157 = vadd.xlane.f32.xlu0 %v2152
        %v2158 = vpop.xlane.xlu0 %2157
        %v2159 = vmul.f32 %v2156, %v1750
        %v2160 = vmul.f32 %v2158, %v1750
        %v2161 = vsub.f32 %v2151, %v2159
        %v2162 = vsub.f32 %v2152, %v2160
        %v2163 = vmul.f32 %v2161, %v2161
        %v2164 = vmul.f32 %v2162, %v2162
        %2165 = vadd.xlane.f32.xlu0 %v2163
        %v2166 = vpop.xlane.xlu0 %2165
        %2167 = vadd.xlane.f32.xlu0 %v2164
        %v2168 = vpop.xlane.xlu0 %2167
        %v2169 = vmul.f32 %v2166, %v1750
        %v2170 = vmul.f32 %v2168, %v1750
        %v2171 = vadd.f32 %v2169, 1e-12
        %v2172 = vadd.f32 %v2170, 1e-12
        %v2173 = vrsqrt.pop %v2171
        %v2174 = vrsqrt.pop %v2172
        %v2175 = vmul.f32 %v2161, %v2173
        %v2176 = vmul.f32 %v2162, %v2174
        %v2178 = vlaneseq
        %v2179 = vshrl.u32 %v2178, 7
        %v2180 = vsub.s32 0, %v2179
        %v2181 = vrot.slane %v2153, %v2180
        %v2183 = vmul.f32 %v2175, %v2181
        %v2184 = vmul.f32 %v2176, %v2181
        %v2186 = vlaneseq
        %v2187 = vshrl.u32 %v2186, 7
        %v2188 = vsub.s32 0, %v2187
        %v2189 = vrot.slane %v2154, %v2188
        %v2191 = vadd.f32 %v2183, %v2189
        %v2192 = vadd.f32 %v2184, %v2189
        %2193 = vst [vmem:[#allocation2] sm:$0xff] %v2191
        %2194 = vst [vmem:[#allocation2 + $0x8] sm:$0xff] %v2192
        %p2195 = scmp.eq.s32.totalorder %s35, 1
        // Predicated region
        $region173: #{tpu_custom_call.1} parent=99 // pred_check
          %p2196 = pneg %p2195
        $region174: #{tpu_custom_call.1} parent=99 // pred_check_branch
          %2198 = sbr.rel (%p2196) target = $region176
        $region175: #{tpu_custom_call.1} parent=99 // pred_region
          %v2199 = vld [vmem:[#allocation22] sm:$0xf]
          %v2200 = vld [vmem:[#allocation22 + $0x4] sm:$0xf]
          %v2201 = vld [vmem:[#allocation22 + $0x8] sm:$0xf]
          %v2202 = vld [vmem:[#allocation22 + $0xc] sm:$0xf]
          %v2203 = vld [vmem:[#allocation22 + $0x10] sm:$0xf]
          %v2204 = vld [vmem:[#allocation22 + $0x14] sm:$0xf]
          %v2205 = vld [vmem:[#allocation22 + $0x18] sm:$0xf]
          %v2206 = vld [vmem:[#allocation22 + $0x1c] sm:$0xf]
          %v2207 = vld [vmem:[#allocation22 + $0x20] sm:$0xf]
          %v2208 = vld [vmem:[#allocation22 + $0x24] sm:$0xf]
          %v2209 = vld [vmem:[#allocation22 + $0x28] sm:$0xf]
          %v2210 = vld [vmem:[#allocation22 + $0x2c] sm:$0xf]
          %v2211 = vld [vmem:[#allocation22 + $0x30] sm:$0xf]
          %v2212 = vld [vmem:[#allocation22 + $0x34] sm:$0xf]
          %v2213 = vld [vmem:[#allocation22 + $0x38] sm:$0xf]
          %v2214 = vld [vmem:[#allocation22 + $0x3c] sm:$0xf]
          %v2215 = vld [vmem:[#allocation23] sm:$0x1]
          %v2216 = vpack.c.bf16 %v2192, %v2191
          %v2218 = vlaneseq
          %v2219 = vshrl.u32 %v2218, 7
          %v2220 = vsub.s32 0, %v2219
          %v2221 = vrot.slane %v2215, %v2220
          %v2239 = vunpack.c.l.b16 %v2199
          %v2240 = vunpack.c.l.b16 %v2200
          %v2241 = vunpack.c.l.b16 %v2201
          %v2242 = vunpack.c.l.b16 %v2202
          %v2243 = vunpack.c.l.b16 %v2203
          %v2244 = vunpack.c.l.b16 %v2204
          %v2245 = vunpack.c.l.b16 %v2205
          %v2246 = vunpack.c.l.b16 %v2206
          %v2247 = vunpack.c.l.b16 %v2207
          %v2248 = vunpack.c.l.b16 %v2208
          %v2249 = vunpack.c.l.b16 %v2209
          %v2250 = vunpack.c.l.b16 %v2210
          %v2251 = vunpack.c.l.b16 %v2211
          %v2252 = vunpack.c.l.b16 %v2212
          %v2253 = vunpack.c.l.b16 %v2213
          %v2254 = vunpack.c.l.b16 %v2214
          %v2255 = vpack.c.b16 %v2240, %v2239
          %v2256 = vpack.c.b16 %v2242, %v2241
          %v2257 = vpack.c.b16 %v2244, %v2243
          %v2258 = vpack.c.b16 %v2246, %v2245
          %v2259 = vpack.c.b16 %v2248, %v2247
          %v2260 = vpack.c.b16 %v2250, %v2249
          %v2261 = vpack.c.b16 %v2252, %v2251
          %v2262 = vpack.c.b16 %v2254, %v2253
          %2271 = vmatprep.subr.bf16.mxu0 0
          %2272 = vmatpush1.bf16.msra.mxu0 %v2255
          %2273 = vmatprep.subr.bf16.mxu0 0
          %2274 = vmatpush1.bf16.msra.mxu0 %v2256
          %2275 = vmatprep.subr.bf16.mxu0 0
          %2276 = vmatpush1.bf16.msra.mxu0 %v2257
          %2277 = vmatprep.subr.bf16.mxu0 0
          %2278 = vmatpush1.bf16.msra.mxu0 %v2258
          %2279 = vmatprep.subr.bf16.mxu0 0
          %2280 = vmatpush1.bf16.msra.mxu0 %v2259
          %2281 = vmatprep.subr.bf16.mxu0 0
          %2282 = vmatpush1.bf16.msra.mxu0 %v2260
          %2283 = vmatprep.subr.bf16.mxu0 0
          %2284 = vmatpush1.bf16.msra.mxu0 %v2261
          %2285 = vmatprep.subr.bf16.mxu0 0
          %2286 = vmatpush1.bf16.msra.mxu0 %v2262
          %2287 = vmatprep.subr.bf16.mxu0 0
          %2288 = vmatpush1.bf16.msra.mxu0 0
          %2289 = vmatprep.subr.bf16.mxu0 0
          %2290 = vmatpush1.bf16.msra.mxu0 0
          %2291 = vmatprep.subr.bf16.mxu0 0
          %2292 = vmatpush1.bf16.msra.mxu0 0
          %2293 = vmatprep.subr.bf16.mxu0 0
          %2294 = vmatpush1.bf16.msra.mxu0 0
          %2295 = vmatprep.subr.bf16.mxu0 0
          %2296 = vmatpush1.bf16.msra.mxu0 0
          %2297 = vmatprep.subr.bf16.mxu0 0
          %2298 = vmatpush1.bf16.msra.mxu0 0
          %2299 = vmatprep.subr.bf16.mxu0 0
          %2300 = vmatpush1.bf16.msra.mxu0 0
          %2301 = vmatprep.subr.bf16.mxu0 0
          %2302 = vmatpush1.bf16.msra.mxu0 0
          %2303 = vmatprep.mubr.bf16.mxu0 0
          %2304 = vmatmul.mubr.bf16.gmra.mrb[0].mxu0 %v2216
          %v2305 = vpop.f32.mrb[0].mxu0
          %v2306 = vadd.f32 %v2221, %v2305
          %v2307 = vpop.f32.mrb[0].mxu0
          %v2308 = vpop.f32.mrb[0].mxu0
          %v2309 = vadd.f32 %v2221, %v2308
          %v2310 = vpop.f32.mrb[0].mxu0
          %2311 = vdwg.mxu0
          %v2312 = vtanh.pop %v2306
          %v2313 = vtanh.pop %v2309
          %v2314 = vld [vmem:[%s18] sm:$0xf]
          %v2315 = vld [vmem:[%s18 + $0x4] sm:$0xf]
          %v2316 = vld [vmem:[%s18 + $0x8] sm:$0xf]
          %v2317 = vld [vmem:[%s18 + $0xc] sm:$0xf]
          %v2318 = vld [vmem:[%s18 + $0x10] sm:$0xf]
          %v2319 = vld [vmem:[%s18 + $0x14] sm:$0xf]
          %v2320 = vld [vmem:[%s18 + $0x18] sm:$0xf]
          %v2321 = vld [vmem:[%s18 + $0x1c] sm:$0xf]
          %v2322 = vld [vmem:[%s18 + $0x20] sm:$0xf]
          %v2323 = vld [vmem:[%s18 + $0x24] sm:$0xf]
          %v2324 = vld [vmem:[%s18 + $0x28] sm:$0xf]
          %v2325 = vld [vmem:[%s18 + $0x2c] sm:$0xf]
          %v2326 = vld [vmem:[%s18 + $0x30] sm:$0xf]
          %v2327 = vld [vmem:[%s18 + $0x34] sm:$0xf]
          %v2328 = vld [vmem:[%s18 + $0x38] sm:$0xf]
          %v2329 = vld [vmem:[%s18 + $0x3c] sm:$0xf]
          %v2330 = vld [vmem:[%s19] sm:$0x1]
          %v2331 = vpack.c.bf16 %v2313, %v2312
          %v2333 = vlaneseq
          %v2334 = vshrl.u32 %v2333, 7
          %v2335 = vsub.s32 0, %v2334
          %v2336 = vrot.slane %v2330, %v2335
          %v2354 = vunpack.c.l.b16 %v2314
          %v2355 = vunpack.c.l.b16 %v2315
          %v2356 = vunpack.c.l.b16 %v2316
          %v2357 = vunpack.c.l.b16 %v2317
          %v2358 = vunpack.c.l.b16 %v2318
          %v2359 = vunpack.c.l.b16 %v2319
          %v2360 = vunpack.c.l.b16 %v2320
          %v2361 = vunpack.c.l.b16 %v2321
          %v2362 = vunpack.c.l.b16 %v2322
          %v2363 = vunpack.c.l.b16 %v2323
          %v2364 = vunpack.c.l.b16 %v2324
          %v2365 = vunpack.c.l.b16 %v2325
          %v2366 = vunpack.c.l.b16 %v2326
          %v2367 = vunpack.c.l.b16 %v2327
          %v2368 = vunpack.c.l.b16 %v2328
          %v2369 = vunpack.c.l.b16 %v2329
          %v2370 = vpack.c.b16 %v2355, %v2354
          %v2371 = vpack.c.b16 %v2357, %v2356
          %v2372 = vpack.c.b16 %v2359, %v2358
          %v2373 = vpack.c.b16 %v2361, %v2360
          %v2374 = vpack.c.b16 %v2363, %v2362
          %v2375 = vpack.c.b16 %v2365, %v2364
          %v2376 = vpack.c.b16 %v2367, %v2366
          %v2377 = vpack.c.b16 %v2369, %v2368
          %2386 = vmatprep.subr.bf16.mxu0 0
          %2387 = vmatpush1.bf16.msra.mxu0 %v2370
          %2388 = vmatprep.subr.bf16.mxu0 0
          %2389 = vmatpush1.bf16.msra.mxu0 %v2371
          %2390 = vmatprep.subr.bf16.mxu0 0
          %2391 = vmatpush1.bf16.msra.mxu0 %v2372
          %2392 = vmatprep.subr.bf16.mxu0 0
          %2393 = vmatpush1.bf16.msra.mxu0 %v2373
          %2394 = vmatprep.subr.bf16.mxu0 0
          %2395 = vmatpush1.bf16.msra.mxu0 %v2374
          %2396 = vmatprep.subr.bf16.mxu0 0
          %2397 = vmatpush1.bf16.msra.mxu0 %v2375
          %2398 = vmatprep.subr.bf16.mxu0 0
          %2399 = vmatpush1.bf16.msra.mxu0 %v2376
          %2400 = vmatprep.subr.bf16.mxu0 0
          %2401 = vmatpush1.bf16.msra.mxu0 %v2377
          %2402 = vmatprep.subr.bf16.mxu0 0
          %2403 = vmatpush1.bf16.msra.mxu0 0
          %2404 = vmatprep.subr.bf16.mxu0 0
          %2405 = vmatpush1.bf16.msra.mxu0 0
          %2406 = vmatprep.subr.bf16.mxu0 0
          %2407 = vmatpush1.bf16.msra.mxu0 0
          %2408 = vmatprep.subr.bf16.mxu0 0
          %2409 = vmatpush1.bf16.msra.mxu0 0
          %2410 = vmatprep.subr.bf16.mxu0 0
          %2411 = vmatpush1.bf16.msra.mxu0 0
          %2412 = vmatprep.subr.bf16.mxu0 0
          %2413 = vmatpush1.bf16.msra.mxu0 0
          %2414 = vmatprep.subr.bf16.mxu0 0
          %2415 = vmatpush1.bf16.msra.mxu0 0
          %2416 = vmatprep.subr.bf16.mxu0 0
          %2417 = vmatpush1.bf16.msra.mxu0 0
          %2418 = vmatprep.mubr.bf16.mxu0 0
          %2419 = vmatmul.mubr.bf16.gmra.mrb[0].mxu0 %v2331
          %v2420 = vpop.f32.mrb[0].mxu0
          %v2421 = vadd.f32 %v2336, %v2420
          %v2422 = vpop.f32.mrb[0].mxu0
          %v2423 = vpop.f32.mrb[0].mxu0
          %v2424 = vadd.f32 %v2336, %v2423
          %v2425 = vpop.f32.mrb[0].mxu0
          %2426 = vdwg.mxu0
          %2427 = vst [vmem:[#allocation24] sm:$0xff] %v2421
          %2428 = vst [vmem:[#allocation24 + $0x8] sm:$0xff] %v2424
        $region176: #{tpu_custom_call.1} parent=99 // pred_fallthru
          _
        // Predicated region
        $region177: #{tpu_custom_call.1} parent=99 // pred_check
          %p2429 = pneg %p528
        $region178: #{tpu_custom_call.1} parent=99 // pred_check_branch
          %2431 = sbr.rel (%p2429) target = $region180
        $region179: #{tpu_custom_call.1} parent=99 // pred_region
          %s2433 = ssub.s32 256, 256
          %2434 = vsyncadd [#allocation5], %s2433
          %s2435 = sshll.u32 [#allocation24], 4
          %s2436 = int_to_ptr.vmem [resolvable:$true] %s2435
          %2441 = dma.vmem_to_hbm [thread:$0]  %s2436, 256, %s20, [#allocation5], 128, 128, 8
        $region180: #{tpu_custom_call.1} parent=99 // pred_fallthru
          _
        // Predicated region
        $region181: #{tpu_custom_call.1} parent=99 // pred_check
          %p2442 = pneg %p528
        $region182: #{tpu_custom_call.1} parent=99 // pred_check_branch
          %2444 = sbr.rel (%p2442) target = $region184
        $region183: #{tpu_custom_call.1} parent=99 // pred_region
          %2445 = dma.done [#allocation5], 256
        $region184: #{tpu_custom_call.1} parent=99 // pred_fallthru
          _
      $region100: #{tpu_custom_call.1} parent=5 // pred_fallthru
        _
      %p2446 = scmp.le.s32.totalorder 2, %s30
      // Predicated region
      $region185: #{tpu_custom_call.1} parent=5 // pred_check
        %p2447 = pneg %p2446
      $region186: #{tpu_custom_call.1} parent=5 // pred_check_branch
        %2449 = sbr.rel (%p2447) target = $region188
      $region187: #{tpu_custom_call.1} parent=5 // pred_region
        %s2450 = ssub.s32 %s30, 2
      $region188: #{tpu_custom_call.1} parent=5 // pred_fallthru
        _
    $region6: #{tpu_custom_call.1} parent=1 // loop_footer
      %s34 = sadd.s32 1, %s30
    $region7: #{tpu_custom_call.1} parent=1 // loop_footer_branch
      %29 = sbr.rel target = $region3
    $region8: #{tpu_custom_call.1} parent=1 // loop_exit
      _
    %2451 = vsyncpa [#allocation4], 1
    %s2452 = scalar_lea.sflag [#allocation4], 1
    %2453 = vsyncpa %s2452, 1
    %2454 = vsyncpa [#allocation7], 1
    %2455 = vsyncpa [#allocation10], 1
    %2456 = vsyncpa [#allocation5], 1
    %s2457 = scalar_lea.sflag [#allocation5], 1
    %2458 = vsyncpa %s2457, 1

</llo_original>
